<compile_context>
chip_gen: v7x
topology: tpu7x:2x2x1
jax: 0.10.0
libtpu: 0.0.40
codegen_flags: <defaults>
</compile_context>

<pallas_src>
import jax
import jax.numpy as jnp
from jax.experimental import pallas as pl
from jax.experimental.pallas import tpu as pltpu


def _round_up(x, n):
    return (x + n - 1) // n * n


def _pick_tb(bsz, mm):
    """Batch-tile rows per grid step."""
    if bsz <= 8:
        return bsz                      # single tiny step; block == full array
    # >= 2 grid steps so dimension_semantics=("parallel",) can shard the batch
    # over both v7x TensorCores; otherwise big tiles (per-step overhead ~0.35us,
    # 128-row granularity fills the MXU on all gens), capped at 512 rows.
    cap = 512 if mm <= 2048 else 256
    half = pl.cdiv(bsz, 2)
    gran = 128 if half >= 128 else 8
    return min(cap, _round_up(half, gran))


def _make_kernel(m, mm_pad):
    """Per-batch-tile kernel for a given (static) matrix size M."""
    mm = m * m
    use_vpu_psd = m <= 16   # small M: stay off the MXU (tiny MxM matmuls)

    def kernel(z_ref, w1_ref, b1_ref, w2_ref, b2_ref, w3_ref, b3_ref, out_ref):
        tb = z_ref.shape[0]
        dot_dtype = w1_ref.dtype        # bf16 (or f32 if prepared with use_bf16=False)

        # --- 3-layer MLP: bf16 operands, f32 accumulation, f32 bias/ReLU ---
        h = jnp.dot(z_ref[...].astype(dot_dtype), w1_ref[...],
                    preferred_element_type=jnp.float32)
        h = jnp.maximum(h + b1_ref[...], 0.0)
        h = jnp.dot(h.astype(dot_dtype), w2_ref[...],
                    preferred_element_type=jnp.float32)
        h = jnp.maximum(h + b2_ref[...], 0.0)
        h = jnp.dot(h.astype(dot_dtype), w3_ref[...],
                    preferred_element_type=jnp.float32)
        h = h + b3_ref[...]                              # (TB, M*M) f32

        # --- PSD construction: OUT = X @ X^T (batched), X = reshape(h) ---
        # TODO(synk): the (TB,mm)->(TB,M,M) reshape is a relayout for small M;
        # it is a few KiB per step here — revisit via the bundle dump if the
        # PSD phase ever dominates.
        x = h.reshape(tb, m, m)
        if use_vpu_psd:
            # Row-wise VPU computation, statically unrolled over the M output
            # rows.  Live intermediate stays at (TB, M, M) f32 (no (TB,M,M,M)
            # broadcast -> no vreg spills / VMEM materialization), and the rows
            # are concatenated directly into the lane-dense flat output, so no
            # output-side reshape is needed.
            rows = []
            for i in range(m):
                # rows[i][b, k] = sum_j x[b,k,j] * x[b,i,j]  ==  OUT[b, i, k]
                rows.append(jnp.sum(x * x[:, i:i + 1, :], axis=-1))
            if mm_pad != mm:
                rows.append(jnp.zeros((tb, mm_pad - mm), jnp.float32))
            out_flat = jnp.concatenate(rows, axis=-1)    # (TB, mm_pad)
        else:
            # Large M: Gram matrix on the MXU, bf16 operands / f32 accumulation
            # (f32 operands would be decomposed into ~3x bf16 MXU passes).
            xb = x.astype(dot_dtype)
            out = jnp.einsum('bij,bkj->bik', xb, xb,
                             preferred_element_type=jnp.float32)
            out_flat = out.reshape(tb, mm)
            if mm_pad != mm:
                out_flat = jnp.concatenate(
                    [out_flat, jnp.zeros((tb, mm_pad - mm), jnp.float32)],
                    axis=-1)

        # Full-width (128-lane) store; wrapper slices off the padding.
        out_ref[...] = out_flat

    return kernel


def ednetwork_mlp_psd(z, params, m):
    """Pallas MLP + PSD construction.  Returns the (B, M, M) f32 PSD matrix.

    `params` should already be in the compute dtype (see prepare_params) so no
    per-call weight cast / extra HBM round trip happens on the forward path.
    """
    w1, b1, w2, b2, w3, b3 = params
    bsz, dim_z = z.shape
    mm = m * m
    mm_pad = _round_up(mm, 128)          # lane-dense output (no masked vst)
    tb = _pick_tb(bsz, mm)
    grid = (pl.cdiv(bsz, tb),)

    wbytes = jnp.dtype(w1.dtype).itemsize
    # Conservative VMEM footprint (weights counted double-buffered in case the
    # Buffered(1) request is unavailable) + pipelined z/out tiles + f32 temps.
    est = (2 * ((dim_z * mm + 2 * mm * mm) * wbytes + 3 * mm * 4)
           + 2 * tb * dim_z * 4
           + 2 * tb * mm_pad * 4
           + 6 * tb * mm_pad * 4)
    # TODO(synk): cap assumes the resident-weight scheme; v7x (64 MiB physical)
    # needs the K/N-tiled W2/W3 path well before this cap is reached.
    vmem_limit = int(min(100 * 2 ** 20, max(32 * 2 ** 20, 2 * est)))

    def build(single_buffer_weights):
        def const_spec(shape):
            # Constant-index (VMEM-resident) operands: single-buffer them so
            # W1/W2/W3/biases don't occupy 2x their size in VMEM.
            if single_buffer_weights:
                return pl.BlockSpec(shape, lambda i: (0, 0),
                                    pipeline_mode=pl.Buffered(1))
            return pl.BlockSpec(shape, lambda i: (0, 0))

        return pl.pallas_call(
            _make_kernel(m, mm_pad),
            out_shape=jax.ShapeDtypeStruct((bsz, mm_pad), jnp.float32),
            grid_spec=pltpu.PrefetchScalarGridSpec(
                num_scalar_prefetch=0,
                grid=grid,
                in_specs=[
                    pl.BlockSpec((tb, dim_z), lambda i: (i, 0)),   # z tile (pipelined)
                    const_spec((dim_z, mm)),                       # W1 (resident)
                    const_spec((1, mm)),                           # b1
                    const_spec((mm, mm)),                          # W2
                    const_spec((1, mm)),                           # b2
                    const_spec((mm, mm)),                          # W3
                    const_spec((1, mm)),                           # b3
                ],
                out_specs=pl.BlockSpec((tb, mm_pad), lambda i: (i, 0)),
            ),
            compiler_params=pltpu.CompilerParams(
                dimension_semantics=("parallel",),   # batch tiles over v7x's 2 TCs
                vmem_limit_bytes=vmem_limit),
        )

    try:
        out_flat = build(single_buffer_weights=True)(z, w1, b1, w2, b2, w3, b3)
    except Exception:
        # Fallback if pipeline_mode=pl.Buffered(1) is unsupported in this jax
        # version: default double-buffered weights (correct, just more VMEM).
        out_flat = build(single_buffer_weights=False)(z, w1, b1, w2, b2, w3, b3)

    return out_flat[:, :mm].reshape(bsz, m, m)


def ednetwork_forward(z, params, m):
    """Full EDNetwork forward (matrix_type='psd'): Pallas MLP+PSD, then eigh."""
    x = ednetwork_mlp_psd(z, params, m)
    # X @ X^T as computed is exactly symmetric (identical products, identical
    # accumulation order for (i,k) and (k,i)), so no explicit symmetrization.
    # TODO(synk): the eigendecomposition (torch.linalg.eigh / EigenDecompositionFcn)
    # is an iterative solver with no clean Pallas equivalent; plain JAX here.
    _, y = jnp.linalg.eigh(x)
    return y


def init_params(key, dim_z, m):
    """Deterministic parameter init (shapes match the nn.Linear layers), f32."""
    mm = m * m
    k = jax.random.split(key, 6)

    def u(rng, shape, fan_in):
        bound = 1.0 / jnp.sqrt(fan_in)
        return jax.random.uniform(rng, shape, jnp.float32, -bound, bound)

    w1 = u(k[0], (dim_z, mm), dim_z)
    b1 = u(k[1], (1, mm), dim_z)
    w2 = u(k[2], (mm, mm), mm)
    b2 = u(k[3], (1, mm), mm)
    w3 = u(k[4], (mm, mm), mm)
    b3 = u(k[5], (1, mm), mm)
    return (w1, b1, w2, b2, w3, b3)


def prepare_params(params, use_bf16=True):
    """One-time cast of weights to the MXU compute dtype (biases stay f32).

    Hoisted out of the forward so the cast (an extra XLA kernel + HBM read/write
    of all weights) does not run on every call.
    """
    w1, b1, w2, b2, w3, b3 = params
    wd = jnp.bfloat16 if use_bf16 else jnp.float32
    return (w1.astype(wd), b1.astype(jnp.float32),
            w2.astype(wd), b2.astype(jnp.float32),
            w3.astype(wd), b3.astype(jnp.float32))


def _reference_mlp_psd(z, params, m):
    """Pure-JAX reference with the same matmul precision as the kernel."""
    w1, b1, w2, b2, w3, b3 = params
    cd = w1.dtype
    h = jnp.dot(z.astype(cd), w1, preferred_element_type=jnp.float32) + b1
    h = jnp.maximum(h, 0.0)
    h = jnp.dot(h.astype(cd), w2, preferred_element_type=jnp.float32) + b2
    h = jnp.maximum(h, 0.0)
    h = jnp.dot(h.astype(cd), w3, preferred_element_type=jnp.float32) + b3
    x = h.reshape(z.shape[0], m, m)
    return jnp.einsum('bij,bkj->bik', x, x, preferred_element_type=jnp.float32)


if __name__ == "__main__":
    B, DIM_Z, M = 2, 8, 8

    key = jax.random.PRNGKey(0)
    kz, kp = jax.random.split(key)
    z = jax.random.normal(kz, (B, DIM_Z), dtype=jnp.float32)
    params = prepare_params(init_params(kp, DIM_Z, M), use_bf16=True)

    # Pallas hot path vs. precision-matched pure-JAX reference.
    x_psd = jax.block_until_ready(ednetwork_mlp_psd(z, params, M))
    x_ref = _reference_mlp_psd(z, params, M)
    assert x_psd.shape == (B, M, M)
    assert jnp.allclose(x_psd, x_ref, atol=1e-2, rtol=1e-2), "PSD mismatch"
    # PSD output must be exactly symmetric (no post-hoc symmetrization needed).
    assert jnp.allclose(x_psd, jnp.swapaxes(x_psd, 1, 2), atol=1e-6), "not symmetric"

    # Full forward (eigenvectors, shape (B, M, M)).
    y = jax.block_until_ready(ednetwork_forward(z, params, M))
    assert y.shape == (B, M, M)
    assert jnp.all(jnp.isfinite(y))

    print("KERNEL_OK")
</pallas_src>

<mosaic_0001>
module attributes {stable_mosaic.version = 11 : i64} {
  func.func @kernel(%arg0: i32, %arg1: memref<2x8xf32, #tpu.memory_space<vmem>>, %arg2: memref<8x64xbf16, #tpu.memory_space<vmem>>, %arg3: memref<1x64xf32, #tpu.memory_space<vmem>>, %arg4: memref<64x64xbf16, #tpu.memory_space<vmem>>, %arg5: memref<1x64xf32, #tpu.memory_space<vmem>>, %arg6: memref<64x64xbf16, #tpu.memory_space<vmem>>, %arg7: memref<1x64xf32, #tpu.memory_space<vmem>>, %arg8: memref<2x128xf32, #tpu.memory_space<vmem>>) attributes {dimension_semantics = [#tpu.dimension_semantics<parallel>], iteration_bounds = array<i64: 1>, scalar_prefetch = 0 : i64, scratch_operands = 0 : i64, tpu.core_type = #tpu.core_type<tc>, window_params = [{transform_indices = @transform_0, window_bounds = array<i64: 2, 8>}, {pipeline_mode = #tpu.pipeline_mode<synchronous>, transform_indices = @transform_1, window_bounds = array<i64: 8, 64>}, {pipeline_mode = #tpu.pipeline_mode<synchronous>, transform_indices = @transform_2, window_bounds = array<i64: 1, 64>}, {pipeline_mode = #tpu.pipeline_mode<synchronous>, transform_indices = @transform_3, window_bounds = array<i64: 64, 64>}, {pipeline_mode = #tpu.pipeline_mode<synchronous>, transform_indices = @transform_4, window_bounds = array<i64: 1, 64>}, {pipeline_mode = #tpu.pipeline_mode<synchronous>, transform_indices = @transform_5, window_bounds = array<i64: 64, 64>}, {pipeline_mode = #tpu.pipeline_mode<synchronous>, transform_indices = @transform_6, window_bounds = array<i64: 1, 64>}, {transform_indices = @transform_7, window_bounds = array<i64: 2, 128>}]} {
    %c0 = arith.constant 0 : index
    %c0_0 = arith.constant 0 : index
    %0 = vector.load %arg1[%c0, %c0_0] : memref<2x8xf32, #tpu.memory_space<vmem>>, vector<2x8xf32>
    %1 = arith.truncf %0 : vector<2x8xf32> to vector<2x8xbf16>
    %c0_1 = arith.constant 0 : index
    %c0_2 = arith.constant 0 : index
    %2 = vector.load %arg2[%c0_1, %c0_2] : memref<8x64xbf16, #tpu.memory_space<vmem>>, vector<8x64xbf16>
    %cst = arith.constant dense<0.000000e+00> : vector<2x64xf32>
    %3 = tpu.matmul %1, %2, %cst {dimension_numbers = #tpu.dot_dimension_numbers<[1], [0], [0], [1], [0, 0, 1, 1], [], []>} : vector<2x8xbf16>, vector<8x64xbf16>, vector<2x64xf32> -> vector<2x64xf32>
    %c0_3 = arith.constant 0 : index
    %c0_4 = arith.constant 0 : index
    %4 = vector.load %arg3[%c0_3, %c0_4] : memref<1x64xf32, #tpu.memory_space<vmem>>, vector<1x64xf32>
    %5 = vector.broadcast %4 : vector<1x64xf32> to vector<2x64xf32>
    %6 = arith.addf %3, %5 : vector<2x64xf32>
    %cst_5 = arith.constant 0.000000e+00 : f32
    %7 = vector.broadcast %cst_5 : f32 to vector<2x64xf32>
    %8 = arith.maximumf %6, %7 : vector<2x64xf32>
    %9 = arith.truncf %8 : vector<2x64xf32> to vector<2x64xbf16>
    %c0_6 = arith.constant 0 : index
    %c0_7 = arith.constant 0 : index
    %10 = vector.load %arg4[%c0_6, %c0_7] : memref<64x64xbf16, #tpu.memory_space<vmem>>, vector<64x64xbf16>
    %cst_8 = arith.constant dense<0.000000e+00> : vector<2x64xf32>
    %11 = tpu.matmul %9, %10, %cst_8 {dimension_numbers = #tpu.dot_dimension_numbers<[1], [0], [0], [1], [0, 0, 1, 1], [], []>} : vector<2x64xbf16>, vector<64x64xbf16>, vector<2x64xf32> -> vector<2x64xf32>
    %c0_9 = arith.constant 0 : index
    %c0_10 = arith.constant 0 : index
    %12 = vector.load %arg5[%c0_9, %c0_10] : memref<1x64xf32, #tpu.memory_space<vmem>>, vector<1x64xf32>
    %13 = vector.broadcast %12 : vector<1x64xf32> to vector<2x64xf32>
    %14 = arith.addf %11, %13 : vector<2x64xf32>
    %cst_11 = arith.constant 0.000000e+00 : f32
    %15 = vector.broadcast %cst_11 : f32 to vector<2x64xf32>
    %16 = arith.maximumf %14, %15 : vector<2x64xf32>
    %17 = arith.truncf %16 : vector<2x64xf32> to vector<2x64xbf16>
    %c0_12 = arith.constant 0 : index
    %c0_13 = arith.constant 0 : index
    %18 = vector.load %arg6[%c0_12, %c0_13] : memref<64x64xbf16, #tpu.memory_space<vmem>>, vector<64x64xbf16>
    %cst_14 = arith.constant dense<0.000000e+00> : vector<2x64xf32>
    %19 = tpu.matmul %17, %18, %cst_14 {dimension_numbers = #tpu.dot_dimension_numbers<[1], [0], [0], [1], [0, 0, 1, 1], [], []>} : vector<2x64xbf16>, vector<64x64xbf16>, vector<2x64xf32> -> vector<2x64xf32>
    %c0_15 = arith.constant 0 : index
    %c0_16 = arith.constant 0 : index
    %20 = vector.load %arg7[%c0_15, %c0_16] : memref<1x64xf32, #tpu.memory_space<vmem>>, vector<1x64xf32>
    %21 = vector.broadcast %20 : vector<1x64xf32> to vector<2x64xf32>
    %22 = arith.addf %19, %21 : vector<2x64xf32>
    %23 = vector.shape_cast %22 : vector<2x64xf32> to vector<2x8x8xf32>
    %24 = vector.extract_strided_slice %23 {offsets = [0, 0, 0], sizes = [2, 1, 8], strides = [1, 1, 1]} : vector<2x8x8xf32> to vector<2x1x8xf32>
    %25 = vector.broadcast %24 : vector<2x1x8xf32> to vector<2x8x8xf32>
    %26 = arith.mulf %23, %25 : vector<2x8x8xf32>
    %cst_17 = arith.constant dense<0.000000e+00> : vector<2x8xf32>
    %27 = vector.multi_reduction <add>, %26, %cst_17 [2] : vector<2x8x8xf32> to vector<2x8xf32>
    %28 = vector.extract_strided_slice %23 {offsets = [0, 1, 0], sizes = [2, 1, 8], strides = [1, 1, 1]} : vector<2x8x8xf32> to vector<2x1x8xf32>
    %29 = vector.broadcast %28 : vector<2x1x8xf32> to vector<2x8x8xf32>
    %30 = arith.mulf %23, %29 : vector<2x8x8xf32>
    %cst_18 = arith.constant dense<0.000000e+00> : vector<2x8xf32>
    %31 = vector.multi_reduction <add>, %30, %cst_18 [2] : vector<2x8x8xf32> to vector<2x8xf32>
    %32 = vector.extract_strided_slice %23 {offsets = [0, 2, 0], sizes = [2, 1, 8], strides = [1, 1, 1]} : vector<2x8x8xf32> to vector<2x1x8xf32>
    %33 = vector.broadcast %32 : vector<2x1x8xf32> to vector<2x8x8xf32>
    %34 = arith.mulf %23, %33 : vector<2x8x8xf32>
    %cst_19 = arith.constant dense<0.000000e+00> : vector<2x8xf32>
    %35 = vector.multi_reduction <add>, %34, %cst_19 [2] : vector<2x8x8xf32> to vector<2x8xf32>
    %36 = vector.extract_strided_slice %23 {offsets = [0, 3, 0], sizes = [2, 1, 8], strides = [1, 1, 1]} : vector<2x8x8xf32> to vector<2x1x8xf32>
    %37 = vector.broadcast %36 : vector<2x1x8xf32> to vector<2x8x8xf32>
    %38 = arith.mulf %23, %37 : vector<2x8x8xf32>
    %cst_20 = arith.constant dense<0.000000e+00> : vector<2x8xf32>
    %39 = vector.multi_reduction <add>, %38, %cst_20 [2] : vector<2x8x8xf32> to vector<2x8xf32>
    %40 = vector.extract_strided_slice %23 {offsets = [0, 4, 0], sizes = [2, 1, 8], strides = [1, 1, 1]} : vector<2x8x8xf32> to vector<2x1x8xf32>
    %41 = vector.broadcast %40 : vector<2x1x8xf32> to vector<2x8x8xf32>
    %42 = arith.mulf %23, %41 : vector<2x8x8xf32>
    %cst_21 = arith.constant dense<0.000000e+00> : vector<2x8xf32>
    %43 = vector.multi_reduction <add>, %42, %cst_21 [2] : vector<2x8x8xf32> to vector<2x8xf32>
    %44 = vector.extract_strided_slice %23 {offsets = [0, 5, 0], sizes = [2, 1, 8], strides = [1, 1, 1]} : vector<2x8x8xf32> to vector<2x1x8xf32>
    %45 = vector.broadcast %44 : vector<2x1x8xf32> to vector<2x8x8xf32>
    %46 = arith.mulf %23, %45 : vector<2x8x8xf32>
    %cst_22 = arith.constant dense<0.000000e+00> : vector<2x8xf32>
    %47 = vector.multi_reduction <add>, %46, %cst_22 [2] : vector<2x8x8xf32> to vector<2x8xf32>
    %48 = vector.extract_strided_slice %23 {offsets = [0, 6, 0], sizes = [2, 1, 8], strides = [1, 1, 1]} : vector<2x8x8xf32> to vector<2x1x8xf32>
    %49 = vector.broadcast %48 : vector<2x1x8xf32> to vector<2x8x8xf32>
    %50 = arith.mulf %23, %49 : vector<2x8x8xf32>
    %cst_23 = arith.constant dense<0.000000e+00> : vector<2x8xf32>
    %51 = vector.multi_reduction <add>, %50, %cst_23 [2] : vector<2x8x8xf32> to vector<2x8xf32>
    %52 = vector.extract_strided_slice %23 {offsets = [0, 7, 0], sizes = [2, 1, 8], strides = [1, 1, 1]} : vector<2x8x8xf32> to vector<2x1x8xf32>
    %53 = vector.broadcast %52 : vector<2x1x8xf32> to vector<2x8x8xf32>
    %54 = arith.mulf %23, %53 : vector<2x8x8xf32>
    %cst_24 = arith.constant dense<0.000000e+00> : vector<2x8xf32>
    %55 = vector.multi_reduction <add>, %54, %cst_24 [2] : vector<2x8x8xf32> to vector<2x8xf32>
    %cst_25 = arith.constant 0.000000e+00 : f32
    %56 = vector.broadcast %cst_25 : f32 to vector<2x64xf32>
    %57 = tpu.concatenate %27, %31, %35, %39, %43, %47, %51, %55, %56 in 1 : vector<2x8xf32>, vector<2x8xf32>, vector<2x8xf32>, vector<2x8xf32>, vector<2x8xf32>, vector<2x8xf32>, vector<2x8xf32>, vector<2x8xf32>, vector<2x64xf32> -> vector<2x128xf32>
    %c0_26 = arith.constant 0 : index
    %c0_27 = arith.constant 0 : index
    %58 = vector.load %arg8[%c0_26, %c0_27] : memref<2x128xf32, #tpu.memory_space<vmem>>, vector<2x128xf32>
    tpu.vector_store %arg8[%c0_26, %c0_27], %57 {strides = array<i32>} : memref<2x128xf32, #tpu.memory_space<vmem>>, vector<2x128xf32>,
    return
  }
  func.func @transform_0(%arg0: i32) -> (i32, i32) {
    %c0_i32 = arith.constant 0 : i32
    %c0_i32_0 = arith.constant 0 : i32
    return %arg0, %c0_i32 : i32, i32
  }
  func.func @transform_1(%arg0: i32) -> (i32, i32) {
    %c0_i32 = arith.constant 0 : i32
    %c0_i32_0 = arith.constant 0 : i32
    %c0_i32_1 = arith.constant 0 : i32
    return %c0_i32, %c0_i32_0 : i32, i32
  }
  func.func @transform_2(%arg0: i32) -> (i32, i32) {
    %c0_i32 = arith.constant 0 : i32
    %c0_i32_0 = arith.constant 0 : i32
    %c0_i32_1 = arith.constant 0 : i32
    return %c0_i32, %c0_i32_0 : i32, i32
  }
  func.func @transform_3(%arg0: i32) -> (i32, i32) {
    %c0_i32 = arith.constant 0 : i32
    %c0_i32_0 = arith.constant 0 : i32
    %c0_i32_1 = arith.constant 0 : i32
    return %c0_i32, %c0_i32_0 : i32, i32
  }
  func.func @transform_4(%arg0: i32) -> (i32, i32) {
    %c0_i32 = arith.constant 0 : i32
    %c0_i32_0 = arith.constant 0 : i32
    %c0_i32_1 = arith.constant 0 : i32
    return %c0_i32, %c0_i32_0 : i32, i32
  }
  func.func @transform_5(%arg0: i32) -> (i32, i32) {
    %c0_i32 = arith.constant 0 : i32
    %c0_i32_0 = arith.constant 0 : i32
    %c0_i32_1 = arith.constant 0 : i32
    return %c0_i32, %c0_i32_0 : i32, i32
  }
  func.func @transform_6(%arg0: i32) -> (i32, i32) {
    %c0_i32 = arith.constant 0 : i32
    %c0_i32_0 = arith.constant 0 : i32
    %c0_i32_1 = arith.constant 0 : i32
    return %c0_i32, %c0_i32_0 : i32, i32
  }
  func.func @transform_7(%arg0: i32) -> (i32, i32) {
    %c0_i32 = arith.constant 0 : i32
    %c0_i32_0 = arith.constant 0 : i32
    return %arg0, %c0_i32 : i32, i32
  }
}

module attributes {stable_mosaic.version = 11 : i64} {
  func.func @kernel(%arg0: i32, %arg1: memref<2x8xf32, #tpu.memory_space<vmem>>, %arg2: memref<8x64xbf16, #tpu.memory_space<vmem>>, %arg3: memref<1x64xf32, #tpu.memory_space<vmem>>, %arg4: memref<64x64xbf16, #tpu.memory_space<vmem>>, %arg5: memref<1x64xf32, #tpu.memory_space<vmem>>, %arg6: memref<64x64xbf16, #tpu.memory_space<vmem>>, %arg7: memref<1x64xf32, #tpu.memory_space<vmem>>, %arg8: memref<2x128xf32, #tpu.memory_space<vmem>>) attributes {dimension_semantics = [#tpu.dimension_semantics<parallel>], iteration_bounds = array<i64: 1>, scalar_prefetch = 0 : i64, scratch_operands = 0 : i64, tpu.core_type = #tpu.core_type<tc>, window_params = [{transform_indices = @transform_0, window_bounds = array<i64: 2, 8>}, {pipeline_mode = #tpu.pipeline_mode<synchronous>, transform_indices = @transform_1, window_bounds = array<i64: 8, 64>}, {pipeline_mode = #tpu.pipeline_mode<synchronous>, transform_indices = @transform_2, window_bounds = array<i64: 1, 64>}, {pipeline_mode = #tpu.pipeline_mode<synchronous>, transform_indices = @transform_3, window_bounds = array<i64: 64, 64>}, {pipeline_mode = #tpu.pipeline_mode<synchronous>, transform_indices = @transform_4, window_bounds = array<i64: 1, 64>}, {pipeline_mode = #tpu.pipeline_mode<synchronous>, transform_indices = @transform_5, window_bounds = array<i64: 64, 64>}, {pipeline_mode = #tpu.pipeline_mode<synchronous>, transform_indices = @transform_6, window_bounds = array<i64: 1, 64>}, {transform_indices = @transform_7, window_bounds = array<i64: 2, 128>}]} {
    %c0 = arith.constant 0 : index
    %c0_0 = arith.constant 0 : index
    %0 = vector.load %arg1[%c0, %c0_0] : memref<2x8xf32, #tpu.memory_space<vmem>>, vector<2x8xf32>
    %1 = arith.truncf %0 : vector<2x8xf32> to vector<2x8xbf16>
    %c0_1 = arith.constant 0 : index
    %c0_2 = arith.constant 0 : index
    %2 = vector.load %arg2[%c0_1, %c0_2] : memref<8x64xbf16, #tpu.memory_space<vmem>>, vector<8x64xbf16>
    %cst = arith.constant dense<0.000000e+00> : vector<2x64xf32>
    %3 = tpu.matmul %1, %2, %cst {dimension_numbers = #tpu.dot_dimension_numbers<[1], [0], [0], [1], [0, 0, 1, 1], [], []>} : vector<2x8xbf16>, vector<8x64xbf16>, vector<2x64xf32> -> vector<2x64xf32>
    %c0_3 = arith.constant 0 : index
    %c0_4 = arith.constant 0 : index
    %4 = vector.load %arg3[%c0_3, %c0_4] : memref<1x64xf32, #tpu.memory_space<vmem>>, vector<1x64xf32>
    %5 = vector.broadcast %4 : vector<1x64xf32> to vector<2x64xf32>
    %6 = arith.addf %3, %5 : vector<2x64xf32>
    %cst_5 = arith.constant 0.000000e+00 : f32
    %7 = vector.broadcast %cst_5 : f32 to vector<2x64xf32>
    %8 = arith.maximumf %6, %7 : vector<2x64xf32>
    %9 = arith.truncf %8 : vector<2x64xf32> to vector<2x64xbf16>
    %c0_6 = arith.constant 0 : index
    %c0_7 = arith.constant 0 : index
    %10 = vector.load %arg4[%c0_6, %c0_7] : memref<64x64xbf16, #tpu.memory_space<vmem>>, vector<64x64xbf16>
    %cst_8 = arith.constant dense<0.000000e+00> : vector<2x64xf32>
    %11 = tpu.matmul %9, %10, %cst_8 {dimension_numbers = #tpu.dot_dimension_numbers<[1], [0], [0], [1], [0, 0, 1, 1], [], []>} : vector<2x64xbf16>, vector<64x64xbf16>, vector<2x64xf32> -> vector<2x64xf32>
    %c0_9 = arith.constant 0 : index
    %c0_10 = arith.constant 0 : index
    %12 = vector.load %arg5[%c0_9, %c0_10] : memref<1x64xf32, #tpu.memory_space<vmem>>, vector<1x64xf32>
    %13 = vector.broadcast %12 : vector<1x64xf32> to vector<2x64xf32>
    %14 = arith.addf %11, %13 : vector<2x64xf32>
    %cst_11 = arith.constant 0.000000e+00 : f32
    %15 = vector.broadcast %cst_11 : f32 to vector<2x64xf32>
    %16 = arith.maximumf %14, %15 : vector<2x64xf32>
    %17 = arith.truncf %16 : vector<2x64xf32> to vector<2x64xbf16>
    %c0_12 = arith.constant 0 : index
    %c0_13 = arith.constant 0 : index
    %18 = vector.load %arg6[%c0_12, %c0_13] : memref<64x64xbf16, #tpu.memory_space<vmem>>, vector<64x64xbf16>
    %cst_14 = arith.constant dense<0.000000e+00> : vector<2x64xf32>
    %19 = tpu.matmul %17, %18, %cst_14 {dimension_numbers = #tpu.dot_dimension_numbers<[1], [0], [0], [1], [0, 0, 1, 1], [], []>} : vector<2x64xbf16>, vector<64x64xbf16>, vector<2x64xf32> -> vector<2x64xf32>
    %c0_15 = arith.constant 0 : index
    %c0_16 = arith.constant 0 : index
    %20 = vector.load %arg7[%c0_15, %c0_16] : memref<1x64xf32, #tpu.memory_space<vmem>>, vector<1x64xf32>
    %21 = vector.broadcast %20 : vector<1x64xf32> to vector<2x64xf32>
    %22 = arith.addf %19, %21 : vector<2x64xf32>
    %23 = vector.shape_cast %22 : vector<2x64xf32> to vector<2x8x8xf32>
    %24 = vector.extract_strided_slice %23 {offsets = [0, 0, 0], sizes = [2, 1, 8], strides = [1, 1, 1]} : vector<2x8x8xf32> to vector<2x1x8xf32>
    %25 = vector.broadcast %24 : vector<2x1x8xf32> to vector<2x8x8xf32>
    %26 = arith.mulf %23, %25 : vector<2x8x8xf32>
    %cst_17 = arith.constant dense<0.000000e+00> : vector<2x8xf32>
    %27 = vector.multi_reduction <add>, %26, %cst_17 [2] : vector<2x8x8xf32> to vector<2x8xf32>
    %28 = vector.extract_strided_slice %23 {offsets = [0, 1, 0], sizes = [2, 1, 8], strides = [1, 1, 1]} : vector<2x8x8xf32> to vector<2x1x8xf32>
    %29 = vector.broadcast %28 : vector<2x1x8xf32> to vector<2x8x8xf32>
    %30 = arith.mulf %23, %29 : vector<2x8x8xf32>
    %cst_18 = arith.constant dense<0.000000e+00> : vector<2x8xf32>
    %31 = vector.multi_reduction <add>, %30, %cst_18 [2] : vector<2x8x8xf32> to vector<2x8xf32>
    %32 = vector.extract_strided_slice %23 {offsets = [0, 2, 0], sizes = [2, 1, 8], strides = [1, 1, 1]} : vector<2x8x8xf32> to vector<2x1x8xf32>
    %33 = vector.broadcast %32 : vector<2x1x8xf32> to vector<2x8x8xf32>
    %34 = arith.mulf %23, %33 : vector<2x8x8xf32>
    %cst_19 = arith.constant dense<0.000000e+00> : vector<2x8xf32>
    %35 = vector.multi_reduction <add>, %34, %cst_19 [2] : vector<2x8x8xf32> to vector<2x8xf32>
    %36 = vector.extract_strided_slice %23 {offsets = [0, 3, 0], sizes = [2, 1, 8], strides = [1, 1, 1]} : vector<2x8x8xf32> to vector<2x1x8xf32>
    %37 = vector.broadcast %36 : vector<2x1x8xf32> to vector<2x8x8xf32>
    %38 = arith.mulf %23, %37 : vector<2x8x8xf32>
    %cst_20 = arith.constant dense<0.000000e+00> : vector<2x8xf32>
    %39 = vector.multi_reduction <add>, %38, %cst_20 [2] : vector<2x8x8xf32> to vector<2x8xf32>
    %40 = vector.extract_strided_slice %23 {offsets = [0, 4, 0], sizes = [2, 1, 8], strides = [1, 1, 1]} : vector<2x8x8xf32> to vector<2x1x8xf32>
    %41 = vector.broadcast %40 : vector<2x1x8xf32> to vector<2x8x8xf32>
    %42 = arith.mulf %23, %41 : vector<2x8x8xf32>
    %cst_21 = arith.constant dense<0.000000e+00> : vector<2x8xf32>
    %43 = vector.multi_reduction <add>, %42, %cst_21 [2] : vector<2x8x8xf32> to vector<2x8xf32>
    %44 = vector.extract_strided_slice %23 {offsets = [0, 5, 0], sizes = [2, 1, 8], strides = [1, 1, 1]} : vector<2x8x8xf32> to vector<2x1x8xf32>
    %45 = vector.broadcast %44 : vector<2x1x8xf32> to vector<2x8x8xf32>
    %46 = arith.mulf %23, %45 : vector<2x8x8xf32>
    %cst_22 = arith.constant dense<0.000000e+00> : vector<2x8xf32>
    %47 = vector.multi_reduction <add>, %46, %cst_22 [2] : vector<2x8x8xf32> to vector<2x8xf32>
    %48 = vector.extract_strided_slice %23 {offsets = [0, 6, 0], sizes = [2, 1, 8], strides = [1, 1, 1]} : vector<2x8x8xf32> to vector<2x1x8xf32>
    %49 = vector.broadcast %48 : vector<2x1x8xf32> to vector<2x8x8xf32>
    %50 = arith.mulf %23, %49 : vector<2x8x8xf32>
    %cst_23 = arith.constant dense<0.000000e+00> : vector<2x8xf32>
    %51 = vector.multi_reduction <add>, %50, %cst_23 [2] : vector<2x8x8xf32> to vector<2x8xf32>
    %52 = vector.extract_strided_slice %23 {offsets = [0, 7, 0], sizes = [2, 1, 8], strides = [1, 1, 1]} : vector<2x8x8xf32> to vector<2x1x8xf32>
    %53 = vector.broadcast %52 : vector<2x1x8xf32> to vector<2x8x8xf32>
    %54 = arith.mulf %23, %53 : vector<2x8x8xf32>
    %cst_24 = arith.constant dense<0.000000e+00> : vector<2x8xf32>
    %55 = vector.multi_reduction <add>, %54, %cst_24 [2] : vector<2x8x8xf32> to vector<2x8xf32>
    %cst_25 = arith.constant 0.000000e+00 : f32
    %56 = vector.broadcast %cst_25 : f32 to vector<2x64xf32>
    %57 = tpu.concatenate %27, %31, %35, %39, %43, %47, %51, %55, %56 in 1 : vector<2x8xf32>, vector<2x8xf32>, vector<2x8xf32>, vector<2x8xf32>, vector<2x8xf32>, vector<2x8xf32>, vector<2x8xf32>, vector<2x8xf32>, vector<2x64xf32> -> vector<2x128xf32>
    %c0_26 = arith.constant 0 : index
    %c0_27 = arith.constant 0 : index
    %58 = vector.load %arg8[%c0_26, %c0_27] : memref<2x128xf32, #tpu.memory_space<vmem>>, vector<2x128xf32>
    tpu.vector_store %arg8[%c0_26, %c0_27], %57 {strides = array<i32>} : memref<2x128xf32, #tpu.memory_space<vmem>>, vector<2x128xf32>,
    return
  }
  func.func @transform_0(%arg0: i32) -> (i32, i32) {
    %c0_i32 = arith.constant 0 : i32
    %c0_i32_0 = arith.constant 0 : i32
    return %arg0, %c0_i32 : i32, i32
  }
  func.func @transform_1(%arg0: i32) -> (i32, i32) {
    %c0_i32 = arith.constant 0 : i32
    %c0_i32_0 = arith.constant 0 : i32
    %c0_i32_1 = arith.constant 0 : i32
    return %c0_i32, %c0_i32_0 : i32, i32
  }
  func.func @transform_2(%arg0: i32) -> (i32, i32) {
    %c0_i32 = arith.constant 0 : i32
    %c0_i32_0 = arith.constant 0 : i32
    %c0_i32_1 = arith.constant 0 : i32
    return %c0_i32, %c0_i32_0 : i32, i32
  }
  func.func @transform_3(%arg0: i32) -> (i32, i32) {
    %c0_i32 = arith.constant 0 : i32
    %c0_i32_0 = arith.constant 0 : i32
    %c0_i32_1 = arith.constant 0 : i32
    return %c0_i32, %c0_i32_0 : i32, i32
  }
  func.func @transform_4(%arg0: i32) -> (i32, i32) {
    %c0_i32 = arith.constant 0 : i32
    %c0_i32_0 = arith.constant 0 : i32
    %c0_i32_1 = arith.constant 0 : i32
    return %c0_i32, %c0_i32_0 : i32, i32
  }
  func.func @transform_5(%arg0: i32) -> (i32, i32) {
    %c0_i32 = arith.constant 0 : i32
    %c0_i32_0 = arith.constant 0 : i32
    %c0_i32_1 = arith.constant 0 : i32
    return %c0_i32, %c0_i32_0 : i32, i32
  }
  func.func @transform_6(%arg0: i32) -> (i32, i32) {
    %c0_i32 = arith.constant 0 : i32
    %c0_i32_0 = arith.constant 0 : i32
    %c0_i32_1 = arith.constant 0 : i32
    return %c0_i32, %c0_i32_0 : i32, i32
  }
  func.func @transform_7(%arg0: i32) -> (i32, i32) {
    %c0_i32 = arith.constant 0 : i32
    %c0_i32_0 = arith.constant 0 : i32
    return %arg0, %c0_i32 : i32, i32
  }
}

</mosaic_0001>

<llo_original>
// kernel: tpu_custom_call.1
$region0: #{tpu_custom_call.1}
  #allocation0 [shape = 'u32[]', space=smem, size = 0x4, offset = 0x4, fixed_abs, tag = 'smem constant byte address 0x4 - core index']
  #allocation1 [shape = 'u32[144,128]{1,0:T(1,128)}', space=vmem, size = 0x12000, scoped, tag = 'internal scratch']
  %s0 = inlined_call_operand.hbm [shape: f32[2,8], index: 0, kind: input, shape index: {}]
  %s1 = inlined_call_operand.hbm [shape: bf16[8,64], index: 1, kind: input, shape index: {}]
  %s2 = inlined_call_operand.vmem [shape: f32[1,64], index: 2, kind: input, shape index: {}]
  %s3 = inlined_call_operand.hbm [shape: bf16[64,64], index: 3, kind: input, shape index: {}]
  %s4 = inlined_call_operand.vmem [shape: f32[1,64], index: 4, kind: input, shape index: {}]
  %s5 = inlined_call_operand.hbm [shape: bf16[64,64], index: 5, kind: input, shape index: {}]
  %s6 = inlined_call_operand.vmem [shape: f32[1,64], index: 6, kind: input, shape index: {}]
  %s7 = inlined_call_operand.hbm [shape: f32[2,128], index: 7, kind: output, shape index: {}]
  %s8 = sld [smem:[#allocation0]]
  $region54: #{tpu_custom_call.1} parent=0
    _
  %s10 = ssub.s32 1, %s8
  %s11 = scalar_select 0, %s10, %s8
  $region1: #{tpu_custom_call.1} parent=0
    #allocation2 [shape = 'u8[1024]{0}', space=vmem, size = 0x400, scoped, tag = 'input window, operand 0, single buffered']
    #allocation3 [shape = 's32[1]{0}', space=sflag, size = 0x4, scoped, tag = 'scoped memory for tpu_custom_call.1']
    #allocation4 [shape = 's32[1]{0}', space=sflag, size = 0x4, scoped, tag = 'scoped memory for tpu_custom_call.1']
    #allocation5 [shape = 'u8[2048]{0}', space=vmem, size = 0x800, scoped, tag = 'input window, operand 1, single buffered']
    #allocation6 [shape = 's32[1]{0}', space=sflag, size = 0x4, scoped, tag = 'scoped memory for tpu_custom_call.1']
    #allocation7 [shape = 'u8[16384]{0}', space=vmem, size = 0x4000, scoped, tag = 'input window, operand 3, single buffered']
    #allocation8 [shape = 'u8[16384]{0}', space=vmem, size = 0x4000, scoped, tag = 'input window, operand 5, single buffered']
    #allocation9 [shape = 's32[1]{0}', space=sflag, size = 0x4, scoped, tag = 'scoped memory for tpu_custom_call.1']
    #allocation10 [shape = 'u8[1024]{0}', space=vmem, size = 0x400, scoped, tag = 'output window, operand 0, single buffered']
    %12 = vsyncpa [#allocation3], 0
    %13 = vsyncpa [#allocation6], 0
    %14 = vsyncpa [#allocation9], 0
    %15 = vsyncpa [#allocation4], 0
    // Predicated region
    $region2: #{tpu_custom_call.1} parent=1 // pred_check
      _
    $region3: #{tpu_custom_call.1} parent=1 // pred_check_branch
      %17 = sbr.rel (0) target = $region5
    $region4: #{tpu_custom_call.1} parent=1 // pred_region
      %s19 = ssub.s32 32, 32
      %20 = vsyncadd [#allocation3], %s19
      %s22 = sshll.u32 [#allocation2], 4
      %s23 = int_to_ptr.vmem [resolvable:$true] %s22
      %25 = dma.hbm_to_vmem [thread:$0]  %s0, 32, %s23, [#allocation3]
    $region5: #{tpu_custom_call.1} parent=1 // pred_fallthru
      _
    // Predicated region
    $region6: #{tpu_custom_call.1} parent=1 // pred_check
      _
    $region7: #{tpu_custom_call.1} parent=1 // pred_check_branch
      %27 = sbr.rel (0) target = $region9
    $region8: #{tpu_custom_call.1} parent=1 // pred_region
      %s29 = ssub.s32 64, 64
      %30 = vsyncadd [#allocation6], %s29
      %s32 = sshll.u32 [#allocation5], 4
      %s33 = int_to_ptr.vmem [resolvable:$true] %s32
      %35 = dma.hbm_to_vmem [thread:$0]  %s1, 64, %s33, [#allocation6]
    $region9: #{tpu_custom_call.1} parent=1 // pred_fallthru
      _
    // Predicated region
    $region10: #{tpu_custom_call.1} parent=1 // pred_check
      _
    $region11: #{tpu_custom_call.1} parent=1 // pred_check_branch
      %37 = sbr.rel (0) target = $region13
    $region12: #{tpu_custom_call.1} parent=1 // pred_region
      _
    $region13: #{tpu_custom_call.1} parent=1 // pred_fallthru
      _
    // Predicated region
    $region14: #{tpu_custom_call.1} parent=1 // pred_check
      _
    $region15: #{tpu_custom_call.1} parent=1 // pred_check_branch
      %39 = sbr.rel (0) target = $region17
    $region16: #{tpu_custom_call.1} parent=1 // pred_region
      %s41 = ssub.s32 512, 512
      %42 = vsyncadd [#allocation6], %s41
      %s43 = sshll.u32 [#allocation7], 4
      %s44 = int_to_ptr.vmem [resolvable:$true] %s43
      %49 = dma.hbm_to_vmem [thread:$0]  %s3, 512, %s44, [#allocation6], 64, 64, 4
    $region17: #{tpu_custom_call.1} parent=1 // pred_fallthru
      _
    // Predicated region
    $region18: #{tpu_custom_call.1} parent=1 // pred_check
      _
    $region19: #{tpu_custom_call.1} parent=1 // pred_check_branch
      %51 = sbr.rel (0) target = $region21
    $region20: #{tpu_custom_call.1} parent=1 // pred_region
      _
    $region21: #{tpu_custom_call.1} parent=1 // pred_fallthru
      _
    // Predicated region
    $region22: #{tpu_custom_call.1} parent=1 // pred_check
      _
    $region23: #{tpu_custom_call.1} parent=1 // pred_check_branch
      %53 = sbr.rel (0) target = $region25
    $region24: #{tpu_custom_call.1} parent=1 // pred_region
      %s55 = ssub.s32 512, 512
      %56 = vsyncadd [#allocation9], %s55
      %s57 = sshll.u32 [#allocation8], 4
      %s58 = int_to_ptr.vmem [resolvable:$true] %s57
      %63 = dma.hbm_to_vmem [thread:$0]  %s5, 512, %s58, [#allocation9], 64, 64, 4
    $region25: #{tpu_custom_call.1} parent=1 // pred_fallthru
      _
    // Predicated region
    $region26: #{tpu_custom_call.1} parent=1 // pred_check
      _
    $region27: #{tpu_custom_call.1} parent=1 // pred_check_branch
      %65 = sbr.rel (0) target = $region29
    $region28: #{tpu_custom_call.1} parent=1 // pred_region
      _
    $region29: #{tpu_custom_call.1} parent=1 // pred_fallthru
      _
    // Predicated region
    $region30: #{tpu_custom_call.1} parent=1 // pred_check
      _
    $region31: #{tpu_custom_call.1} parent=1 // pred_check_branch
      %67 = sbr.rel (0) target = $region33
    $region32: #{tpu_custom_call.1} parent=1 // pred_region
      %68 = dma.done [#allocation3], 32
    $region33: #{tpu_custom_call.1} parent=1 // pred_fallthru
      _
    // Predicated region
    $region34: #{tpu_custom_call.1} parent=1 // pred_check
      _
    $region35: #{tpu_custom_call.1} parent=1 // pred_check_branch
      %70 = sbr.rel (0) target = $region37
    $region36: #{tpu_custom_call.1} parent=1 // pred_region
      %71 = dma.done [#allocation6], 64
    $region37: #{tpu_custom_call.1} parent=1 // pred_fallthru
      _
    // Predicated region
    $region38: #{tpu_custom_call.1} parent=1 // pred_check
      _
    $region39: #{tpu_custom_call.1} parent=1 // pred_check_branch
      %73 = sbr.rel (0) target = $region41
    $region40: #{tpu_custom_call.1} parent=1 // pred_region
      %74 = dma.done [#allocation6], 512
    $region41: #{tpu_custom_call.1} parent=1 // pred_fallthru
      _
    // Predicated region
    $region42: #{tpu_custom_call.1} parent=1 // pred_check
      _
    $region43: #{tpu_custom_call.1} parent=1 // pred_check_branch
      %76 = sbr.rel (0) target = $region45
    $region44: #{tpu_custom_call.1} parent=1 // pred_region
      %77 = dma.done [#allocation9], 512
    $region45: #{tpu_custom_call.1} parent=1 // pred_fallthru
      _
    %v79 = vld [vmem:[#allocation2] sm:$0x3]
    %v80 = vpack.c.bf16 %v79, %v79
    %v81 = vld [vmem:[#allocation5] sm:$0xf]
    %v82 = vld [vmem:[%s2] sm:$0x1]
    %v84 = vlaneseq
    %v85 = vshrl.u32 %v84, 7
    %v86 = vsub.s32 0, %v85
    %v87 = vrot.slane %v82, %v86
    %vm89 = vcmask 64512
    %v91 = vsel %vm89, %v80, 0
    %vm93 = vcmask 1043456
    %v95 = vsel %vm93, %v81, 0
    %97 = vmatprep.subr.bf16.mxu0 0
    %98 = vmatpush1.bf16.msra.mxu0 %v95
    %99 = vmatprep.subr.bf16.mxu0 0
    %100 = vmatpush1.bf16.msra.mxu0 0
    %101 = vmatprep.subr.bf16.mxu0 0
    %102 = vmatpush1.bf16.msra.mxu0 0
    %103 = vmatprep.subr.bf16.mxu0 0
    %104 = vmatpush1.bf16.msra.mxu0 0
    %105 = vmatprep.subr.bf16.mxu0 0
    %106 = vmatpush1.bf16.msra.mxu0 0
    %107 = vmatprep.subr.bf16.mxu0 0
    %108 = vmatpush1.bf16.msra.mxu0 0
    %109 = vmatprep.subr.bf16.mxu0 0
    %110 = vmatpush1.bf16.msra.mxu0 0
    %111 = vmatprep.subr.bf16.mxu0 0
    %112 = vmatpush1.bf16.msra.mxu0 0
    %113 = vmatprep.subr.bf16.mxu0 0
    %114 = vmatpush1.bf16.msra.mxu0 0
    %115 = vmatprep.subr.bf16.mxu0 0
    %116 = vmatpush1.bf16.msra.mxu0 0
    %117 = vmatprep.subr.bf16.mxu0 0
    %118 = vmatpush1.bf16.msra.mxu0 0
    %119 = vmatprep.subr.bf16.mxu0 0
    %120 = vmatpush1.bf16.msra.mxu0 0
    %121 = vmatprep.subr.bf16.mxu0 0
    %122 = vmatpush1.bf16.msra.mxu0 0
    %123 = vmatprep.subr.bf16.mxu0 0
    %124 = vmatpush1.bf16.msra.mxu0 0
    %125 = vmatprep.subr.bf16.mxu0 0
    %126 = vmatpush1.bf16.msra.mxu0 0
    %127 = vmatprep.subr.bf16.mxu0 0
    %128 = vmatpush1.bf16.msra.mxu0 0
    %129 = vmatprep.mubr.bf16.mxu0 0
    %130 = vmatmul.mubr.bf16.gmra.mrb[0].mxu0 %v91
    %v131 = vpop.f32.mrb[0].mxu0
    %v132 = vadd.f32 %v87, %v131
    %v133 = vpop.f32.mrb[0].mxu0
    %v134 = vpop.f32.mrb[0].mxu0
    %v135 = vpop.f32.mrb[0].mxu0
    %136 = vdwg.mxu0
    %v137 = vmax.f32 %v132, 0.0
    %v138 = vpack.c.bf16 %v137, %v137
    %v139 = vld [vmem:[#allocation7] sm:$0xf]
    %v140 = vld [vmem:[#allocation7 + $0x4] sm:$0xf]
    %v141 = vld [vmem:[#allocation7 + $0x8] sm:$0xf]
    %v142 = vld [vmem:[#allocation7 + $0xc] sm:$0xf]
    %v143 = vld [vmem:[#allocation7 + $0x10] sm:$0xf]
    %v144 = vld [vmem:[#allocation7 + $0x14] sm:$0xf]
    %v145 = vld [vmem:[#allocation7 + $0x18] sm:$0xf]
    %v146 = vld [vmem:[#allocation7 + $0x1c] sm:$0xf]
    %v147 = vld [vmem:[%s4] sm:$0x1]
    %v149 = vlaneseq
    %v150 = vshrl.u32 %v149, 7
    %v151 = vsub.s32 0, %v150
    %v152 = vrot.slane %v147, %v151
    %v162 = vunpack.c.l.b16 %v139
    %v163 = vunpack.c.l.b16 %v140
    %v164 = vunpack.c.l.b16 %v141
    %v165 = vunpack.c.l.b16 %v142
    %v166 = vunpack.c.l.b16 %v143
    %v167 = vunpack.c.l.b16 %v144
    %v168 = vunpack.c.l.b16 %v145
    %v169 = vunpack.c.l.b16 %v146
    %v170 = vpack.c.b16 %v163, %v162
    %v171 = vpack.c.b16 %v165, %v164
    %v172 = vpack.c.b16 %v167, %v166
    %v173 = vpack.c.b16 %v169, %v168
    %vm178 = vcmask 523264
    %v180 = vsel %vm178, %v138, 0
    %182 = vmatprep.subr.bf16.mxu0 0
    %183 = vmatpush1.bf16.msra.mxu0 %v170
    %184 = vmatprep.subr.bf16.mxu0 0
    %185 = vmatpush1.bf16.msra.mxu0 %v171
    %186 = vmatprep.subr.bf16.mxu0 0
    %187 = vmatpush1.bf16.msra.mxu0 %v172
    %188 = vmatprep.subr.bf16.mxu0 0
    %189 = vmatpush1.bf16.msra.mxu0 %v173
    %190 = vmatprep.subr.bf16.mxu0 0
    %191 = vmatpush1.bf16.msra.mxu0 0
    %192 = vmatprep.subr.bf16.mxu0 0
    %193 = vmatpush1.bf16.msra.mxu0 0
    %194 = vmatprep.subr.bf16.mxu0 0
    %195 = vmatpush1.bf16.msra.mxu0 0
    %196 = vmatprep.subr.bf16.mxu0 0
    %197 = vmatpush1.bf16.msra.mxu0 0
    %198 = vmatprep.subr.bf16.mxu0 0
    %199 = vmatpush1.bf16.msra.mxu0 0
    %200 = vmatprep.subr.bf16.mxu0 0
    %201 = vmatpush1.bf16.msra.mxu0 0
    %202 = vmatprep.subr.bf16.mxu0 0
    %203 = vmatpush1.bf16.msra.mxu0 0
    %204 = vmatprep.subr.bf16.mxu0 0
    %205 = vmatpush1.bf16.msra.mxu0 0
    %206 = vmatprep.subr.bf16.mxu0 0
    %207 = vmatpush1.bf16.msra.mxu0 0
    %208 = vmatprep.subr.bf16.mxu0 0
    %209 = vmatpush1.bf16.msra.mxu0 0
    %210 = vmatprep.subr.bf16.mxu0 0
    %211 = vmatpush1.bf16.msra.mxu0 0
    %212 = vmatprep.subr.bf16.mxu0 0
    %213 = vmatpush1.bf16.msra.mxu0 0
    %214 = vmatprep.mubr.bf16.mxu0 0
    %215 = vmatmul.mubr.bf16.gmra.mrb[0].mxu0 %v180
    %v216 = vpop.f32.mrb[0].mxu0
    %v217 = vadd.f32 %v152, %v216
    %v218 = vpop.f32.mrb[0].mxu0
    %v219 = vpop.f32.mrb[0].mxu0
    %v220 = vpop.f32.mrb[0].mxu0
    %221 = vdwg.mxu0
    %v222 = vmax.f32 %v217, 0.0
    %v223 = vpack.c.bf16 %v222, %v222
    %v224 = vld [vmem:[#allocation8] sm:$0xf]
    %v225 = vld [vmem:[#allocation8 + $0x4] sm:$0xf]
    %v226 = vld [vmem:[#allocation8 + $0x8] sm:$0xf]
    %v227 = vld [vmem:[#allocation8 + $0xc] sm:$0xf]
    %v228 = vld [vmem:[#allocation8 + $0x10] sm:$0xf]
    %v229 = vld [vmem:[#allocation8 + $0x14] sm:$0xf]
    %v230 = vld [vmem:[#allocation8 + $0x18] sm:$0xf]
    %v231 = vld [vmem:[#allocation8 + $0x1c] sm:$0xf]
    %v232 = vld [vmem:[%s6] sm:$0x1]
    %v234 = vlaneseq
    %v235 = vshrl.u32 %v234, 7
    %v236 = vsub.s32 0, %v235
    %v237 = vrot.slane %v232, %v236
    %v247 = vunpack.c.l.b16 %v224
    %v248 = vunpack.c.l.b16 %v225
    %v249 = vunpack.c.l.b16 %v226
    %v250 = vunpack.c.l.b16 %v227
    %v251 = vunpack.c.l.b16 %v228
    %v252 = vunpack.c.l.b16 %v229
    %v253 = vunpack.c.l.b16 %v230
    %v254 = vunpack.c.l.b16 %v231
    %v255 = vpack.c.b16 %v248, %v247
    %v256 = vpack.c.b16 %v250, %v249
    %v257 = vpack.c.b16 %v252, %v251
    %v258 = vpack.c.b16 %v254, %v253
    %v264 = vsel %vm178, %v223, 0
    %266 = vmatprep.subr.bf16.mxu0 0
    %267 = vmatpush1.bf16.msra.mxu0 %v255
    %268 = vmatprep.subr.bf16.mxu0 0
    %269 = vmatpush1.bf16.msra.mxu0 %v256
    %270 = vmatprep.subr.bf16.mxu0 0
    %271 = vmatpush1.bf16.msra.mxu0 %v257
    %272 = vmatprep.subr.bf16.mxu0 0
    %273 = vmatpush1.bf16.msra.mxu0 %v258
    %274 = vmatprep.subr.bf16.mxu0 0
    %275 = vmatpush1.bf16.msra.mxu0 0
    %276 = vmatprep.subr.bf16.mxu0 0
    %277 = vmatpush1.bf16.msra.mxu0 0
    %278 = vmatprep.subr.bf16.mxu0 0
    %279 = vmatpush1.bf16.msra.mxu0 0
    %280 = vmatprep.subr.bf16.mxu0 0
    %281 = vmatpush1.bf16.msra.mxu0 0
    %282 = vmatprep.subr.bf16.mxu0 0
    %283 = vmatpush1.bf16.msra.mxu0 0
    %284 = vmatprep.subr.bf16.mxu0 0
    %285 = vmatpush1.bf16.msra.mxu0 0
    %286 = vmatprep.subr.bf16.mxu0 0
    %287 = vmatpush1.bf16.msra.mxu0 0
    %288 = vmatprep.subr.bf16.mxu0 0
    %289 = vmatpush1.bf16.msra.mxu0 0
    %290 = vmatprep.subr.bf16.mxu0 0
    %291 = vmatpush1.bf16.msra.mxu0 0
    %292 = vmatprep.subr.bf16.mxu0 0
    %293 = vmatpush1.bf16.msra.mxu0 0
    %294 = vmatprep.subr.bf16.mxu0 0
    %295 = vmatpush1.bf16.msra.mxu0 0
    %296 = vmatprep.subr.bf16.mxu0 0
    %297 = vmatpush1.bf16.msra.mxu0 0
    %298 = vmatprep.mubr.bf16.mxu0 0
    %299 = vmatmul.mubr.bf16.gmra.mrb[0].mxu0 %v264
    %v300 = vpop.f32.mrb[0].mxu0
    %v301 = vadd.f32 %v237, %v300
    %v302 = vpop.f32.mrb[0].mxu0
    %v303 = vpop.f32.mrb[0].mxu0
    %v304 = vpop.f32.mrb[0].mxu0
    %305 = vdwg.mxu0
    %307 = vrot.lane.b32.xlu0 %v301, 120
    %v308 = vpop.permute.xlu0 %307
    %310 = vrot.lane.b32.xlu0 %v301, 112
    %v311 = vpop.permute.xlu0 %310
    %313 = vrot.lane.b32.xlu0 %v301, 104
    %v314 = vpop.permute.xlu0 %313
    %316 = vrot.lane.b32.xlu0 %v301, 96
    %v317 = vpop.permute.xlu0 %316
    %319 = vrot.lane.b32.xlu0 %v301, 88
    %v320 = vpop.permute.xlu0 %319
    %322 = vrot.lane.b32.xlu0 %v301, 80
    %v323 = vpop.permute.xlu0 %322
    %325 = vrot.lane.b32.xlu0 %v301, 72
    %v326 = vpop.permute.xlu0 %325
    %v328 = vcombine.low %v301, %v311
    %v330 = vunpack.c.l.s4 1983009808
    %v331 = vunpack.c.0.s8 %v330
    %v332 = vlaneseq
    %v333 = vshrl.u32 %v332, 7
    %v334 = vsub.s32 %v331, %v333
    %v335 = vrot.slane %v328, %v334
    %v336 = vcombine.low %v308, %v314
    %v338 = vunpack.c.l.s4 1983009808
    %v339 = vunpack.c.0.s8 %v338
    %v340 = vlaneseq
    %v341 = vshrl.u32 %v340, 7
    %v342 = vsub.s32 %v339, %v341
    %v343 = vrot.slane %v336, %v342
    %v344 = vcombine.low %v317, %v323
    %v346 = vunpack.c.l.s4 1983009808
    %v347 = vunpack.c.0.s8 %v346
    %v348 = vlaneseq
    %v349 = vshrl.u32 %v348, 7
    %v350 = vsub.s32 %v347, %v349
    %v351 = vrot.slane %v344, %v350
    %v352 = vcombine.low %v320, %v326
    %v354 = vunpack.c.l.s4 1983009808
    %v355 = vunpack.c.0.s8 %v354
    %v356 = vlaneseq
    %v357 = vshrl.u32 %v356, 7
    %v358 = vsub.s32 %v355, %v357
    %v359 = vrot.slane %v352, %v358
    %v360 = vcombine.low %v335, %v343
    %v362 = vunpack.c.l.s4 1934713408
    %v363 = vunpack.c.0.s8 %v362
    %v364 = vlaneseq
    %v365 = vshrl.u32 %v364, 7
    %v366 = vsub.s32 %v363, %v365
    %v367 = vrot.slane %v360, %v366
    %v368 = vcombine.low %v351, %v359
    %v370 = vunpack.c.l.s4 1934713408
    %v371 = vunpack.c.0.s8 %v370
    %v372 = vlaneseq
    %v373 = vshrl.u32 %v372, 7
    %v374 = vsub.s32 %v371, %v373
    %v375 = vrot.slane %v368, %v374
    %v376 = vcombine.low %v367, %v375
    %v377 = vcombine.high %v367, %v375
    %v378 = vlaneseq
    %v379 = vshrl.u32 %v378, 7
    %v380 = vsub.s32 0, %v379
    %v381 = vrot.slane %v376, %v380
    %v382 = vlaneseq
    %v383 = vshrl.u32 %v382, 7
    %v384 = vsub.s32 0, %v383
    %v385 = vrot.slane %v377, %v384
    %v386 = vmul.f32 %v376, %v381
    %v387 = vmul.f32 %v377, %v385
    %v388 = vsel %vm89, %v386, 0.0
    %389 = vadd.xlane.f32.xlu0 %v388
    %v390 = vpop.xlane.xlu0 %389
    %v391 = vsel %vm89, %v387, 0.0
    %392 = vadd.xlane.f32.xlu0 %v391
    %v393 = vpop.xlane.xlu0 %392
    %v394 = vlaneseq
    %v395 = vshrl.u32 %v394, 7
    %v396 = vsub.s32 1, %v395
    %v397 = vrot.slane %v376, %v396
    %v398 = vlaneseq
    %v399 = vshrl.u32 %v398, 7
    %v400 = vsub.s32 1, %v399
    %v401 = vrot.slane %v377, %v400
    %v402 = vmul.f32 %v376, %v397
    %v403 = vmul.f32 %v377, %v401
    %v404 = vsel %vm89, %v402, 0.0
    %405 = vadd.xlane.f32.xlu0 %v404
    %v406 = vpop.xlane.xlu0 %405
    %v407 = vsel %vm89, %v403, 0.0
    %408 = vadd.xlane.f32.xlu0 %v407
    %v409 = vpop.xlane.xlu0 %408
    %v410 = vlaneseq
    %v411 = vshrl.u32 %v410, 7
    %v412 = vsub.s32 2, %v411
    %v413 = vrot.slane %v376, %v412
    %v414 = vlaneseq
    %v415 = vshrl.u32 %v414, 7
    %v416 = vsub.s32 2, %v415
    %v417 = vrot.slane %v377, %v416
    %v418 = vmul.f32 %v376, %v413
    %v419 = vmul.f32 %v377, %v417
    %v420 = vsel %vm89, %v418, 0.0
    %421 = vadd.xlane.f32.xlu0 %v420
    %v422 = vpop.xlane.xlu0 %421
    %v423 = vsel %vm89, %v419, 0.0
    %424 = vadd.xlane.f32.xlu0 %v423
    %v425 = vpop.xlane.xlu0 %424
    %v426 = vlaneseq
    %v427 = vshrl.u32 %v426, 7
    %v428 = vsub.s32 3, %v427
    %v429 = vrot.slane %v376, %v428
    %v430 = vlaneseq
    %v431 = vshrl.u32 %v430, 7
    %v432 = vsub.s32 3, %v431
    %v433 = vrot.slane %v377, %v432
    %v434 = vmul.f32 %v376, %v429
    %v435 = vmul.f32 %v377, %v433
    %v436 = vsel %vm89, %v434, 0.0
    %437 = vadd.xlane.f32.xlu0 %v436
    %v438 = vpop.xlane.xlu0 %437
    %v439 = vsel %vm89, %v435, 0.0
    %440 = vadd.xlane.f32.xlu0 %v439
    %v441 = vpop.xlane.xlu0 %440
    %v442 = vlaneseq
    %v443 = vshrl.u32 %v442, 7
    %v444 = vsub.s32 4, %v443
    %v445 = vrot.slane %v376, %v444
    %v446 = vlaneseq
    %v447 = vshrl.u32 %v446, 7
    %v448 = vsub.s32 4, %v447
    %v449 = vrot.slane %v377, %v448
    %v450 = vmul.f32 %v376, %v445
    %v451 = vmul.f32 %v377, %v449
    %v452 = vsel %vm89, %v450, 0.0
    %453 = vadd.xlane.f32.xlu0 %v452
    %v454 = vpop.xlane.xlu0 %453
    %v455 = vsel %vm89, %v451, 0.0
    %456 = vadd.xlane.f32.xlu0 %v455
    %v457 = vpop.xlane.xlu0 %456
    %v458 = vlaneseq
    %v459 = vshrl.u32 %v458, 7
    %v460 = vsub.s32 5, %v459
    %v461 = vrot.slane %v376, %v460
    %v462 = vlaneseq
    %v463 = vshrl.u32 %v462, 7
    %v464 = vsub.s32 5, %v463
    %v465 = vrot.slane %v377, %v464
    %v466 = vmul.f32 %v376, %v461
    %v467 = vmul.f32 %v377, %v465
    %v468 = vsel %vm89, %v466, 0.0
    %469 = vadd.xlane.f32.xlu0 %v468
    %v470 = vpop.xlane.xlu0 %469
    %v471 = vsel %vm89, %v467, 0.0
    %472 = vadd.xlane.f32.xlu0 %v471
    %v473 = vpop.xlane.xlu0 %472
    %v474 = vlaneseq
    %v475 = vshrl.u32 %v474, 7
    %v476 = vsub.s32 6, %v475
    %v477 = vrot.slane %v376, %v476
    %v478 = vlaneseq
    %v479 = vshrl.u32 %v478, 7
    %v480 = vsub.s32 6, %v479
    %v481 = vrot.slane %v377, %v480
    %v482 = vmul.f32 %v376, %v477
    %v483 = vmul.f32 %v377, %v481
    %v484 = vsel %vm89, %v482, 0.0
    %485 = vadd.xlane.f32.xlu0 %v484
    %v486 = vpop.xlane.xlu0 %485
    %v487 = vsel %vm89, %v483, 0.0
    %488 = vadd.xlane.f32.xlu0 %v487
    %v489 = vpop.xlane.xlu0 %488
    %v490 = vlaneseq
    %v491 = vshrl.u32 %v490, 7
    %v492 = vsub.s32 7, %v491
    %v493 = vrot.slane %v376, %v492
    %v494 = vlaneseq
    %v495 = vshrl.u32 %v494, 7
    %v496 = vsub.s32 7, %v495
    %v497 = vrot.slane %v377, %v496
    %v498 = vmul.f32 %v376, %v493
    %v499 = vmul.f32 %v377, %v497
    %v500 = vsel %vm89, %v498, 0.0
    %501 = vadd.xlane.f32.xlu0 %v500
    %v502 = vpop.xlane.xlu0 %501
    %v503 = vsel %vm89, %v499, 0.0
    %504 = vadd.xlane.f32.xlu0 %v503
    %v505 = vpop.xlane.xlu0 %504
    %v508 = vlaneseq
    %v509 = vand.u32 %v508, 127
    %v510 = vlaneseq
    %v511 = vshrl.u32 %v510, 7
    %v512 = vsub.s32 %v509, %v511
    %v513 = vrot.slane %v390, %v512
    %v514 = vlaneseq
    %v515 = vshrl.u32 %v514, 7
    %v516 = vsub.s32 %v509, %v515
    %v517 = vrot.slane %v393, %v516
    %vm518 = vcmask 1041409
    %v519 = vsel %vm518, %v517, %v513
    %v523 = vadd.s32 %v509, 4294967288
    %v524 = vlaneseq
    %v525 = vshrl.u32 %v524, 7
    %v526 = vsub.s32 %v523, %v525
    %v527 = vrot.slane %v406, %v526
    %v528 = vlaneseq
    %v529 = vshrl.u32 %v528, 7
    %v530 = vsub.s32 %v523, %v529
    %v531 = vrot.slane %v409, %v530
    %v532 = vsel %vm518, %v531, %v527
    %v536 = vadd.s32 %v509, 4294967280
    %v537 = vlaneseq
    %v538 = vshrl.u32 %v537, 7
    %v539 = vsub.s32 %v536, %v538
    %v540 = vrot.slane %v422, %v539
    %v541 = vlaneseq
    %v542 = vshrl.u32 %v541, 7
    %v543 = vsub.s32 %v536, %v542
    %v544 = vrot.slane %v425, %v543
    %v545 = vsel %vm518, %v544, %v540
    %v549 = vadd.s32 %v509, 4294967272
    %v550 = vlaneseq
    %v551 = vshrl.u32 %v550, 7
    %v552 = vsub.s32 %v549, %v551
    %v553 = vrot.slane %v438, %v552
    %v554 = vlaneseq
    %v555 = vshrl.u32 %v554, 7
    %v556 = vsub.s32 %v549, %v555
    %v557 = vrot.slane %v441, %v556
    %v558 = vsel %vm518, %v557, %v553
    %v562 = vadd.s32 %v509, 4294967264
    %v563 = vlaneseq
    %v564 = vshrl.u32 %v563, 7
    %v565 = vsub.s32 %v562, %v564
    %v566 = vrot.slane %v454, %v565
    %v567 = vlaneseq
    %v568 = vshrl.u32 %v567, 7
    %v569 = vsub.s32 %v562, %v568
    %v570 = vrot.slane %v457, %v569
    %v571 = vsel %vm518, %v570, %v566
    %v575 = vadd.s32 %v509, 4294967256
    %v576 = vlaneseq
    %v577 = vshrl.u32 %v576, 7
    %v578 = vsub.s32 %v575, %v577
    %v579 = vrot.slane %v470, %v578
    %v580 = vlaneseq
    %v581 = vshrl.u32 %v580, 7
    %v582 = vsub.s32 %v575, %v581
    %v583 = vrot.slane %v473, %v582
    %v584 = vsel %vm518, %v583, %v579
    %v588 = vadd.s32 %v509, 4294967248
    %v589 = vlaneseq
    %v590 = vshrl.u32 %v589, 7
    %v591 = vsub.s32 %v588, %v590
    %v592 = vrot.slane %v486, %v591
    %v593 = vlaneseq
    %v594 = vshrl.u32 %v593, 7
    %v595 = vsub.s32 %v588, %v594
    %v596 = vrot.slane %v489, %v595
    %v597 = vsel %vm518, %v596, %v592
    %v601 = vadd.s32 %v509, 4294967240
    %v602 = vlaneseq
    %v603 = vshrl.u32 %v602, 7
    %v604 = vsub.s32 %v601, %v603
    %v605 = vrot.slane %v502, %v604
    %v606 = vlaneseq
    %v607 = vshrl.u32 %v606, 7
    %v608 = vsub.s32 %v601, %v607
    %v609 = vrot.slane %v505, %v608
    %v610 = vsel %vm518, %v609, %v605
    %v612 = vsel %vm89, %v519, %v532
    %vm613 = vcmask 130048
    %v614 = vsel %vm613, %v612, %v545
    %vm615 = vcmask 195584
    %v616 = vsel %vm615, %v614, %v558
    %vm617 = vcmask 261120
    %v618 = vsel %vm617, %v616, %v571
    %vm619 = vcmask 326656
    %v620 = vsel %vm619, %v618, %v584
    %vm621 = vcmask 392192
    %v622 = vsel %vm621, %v620, %v597
    %vm623 = vcmask 457728
    %v624 = vsel %vm623, %v622, %v610
    %v625 = vsel %vm178, %v624, 0.0
    %626 = vst [vmem:[#allocation10] sm:$0x3] %v625
    // Predicated region
    $region46: #{tpu_custom_call.1} parent=1 // pred_check
      _
    $region47: #{tpu_custom_call.1} parent=1 // pred_check_branch
      %628 = sbr.rel (0) target = $region49
    $region48: #{tpu_custom_call.1} parent=1 // pred_region
      %s630 = ssub.s32 32, 32
      %631 = vsyncadd [#allocation4], %s630
      %s633 = sshll.u32 [#allocation10], 4
      %s634 = int_to_ptr.vmem [resolvable:$true] %s633
      %636 = dma.vmem_to_hbm [thread:$0]  %s634, 32, %s7, [#allocation4]
    $region49: #{tpu_custom_call.1} parent=1 // pred_fallthru
      _
    // Predicated region
    $region50: #{tpu_custom_call.1} parent=1 // pred_check
      _
    $region51: #{tpu_custom_call.1} parent=1 // pred_check_branch
      %638 = sbr.rel (0) target = $region53
    $region52: #{tpu_custom_call.1} parent=1 // pred_region
      %639 = dma.done [#allocation4], 32
    $region53: #{tpu_custom_call.1} parent=1 // pred_fallthru
      _
    %640 = vsyncpa [#allocation3], 1
    %641 = vsyncpa [#allocation6], 1
    %642 = vsyncpa [#allocation9], 1
    %643 = vsyncpa [#allocation4], 1

// kernel: tpu_custom_call.1
$region0: #{tpu_custom_call.1}
  #allocation0 [shape = 'u32[]', space=smem, size = 0x4, offset = 0x4, fixed_abs, tag = 'smem constant byte address 0x4 - core index']
  #allocation1 [shape = 'u32[144,128]{1,0:T(1,128)}', space=vmem, size = 0x12000, scoped, tag = 'internal scratch']
  %s0 = inlined_call_operand.hbm [shape: f32[2,8], index: 0, kind: input, shape index: {}]
  %s1 = inlined_call_operand.hbm [shape: bf16[8,64], index: 1, kind: input, shape index: {}]
  %s2 = inlined_call_operand.vmem [shape: f32[1,64], index: 2, kind: input, shape index: {}]
  %s3 = inlined_call_operand.hbm [shape: bf16[64,64], index: 3, kind: input, shape index: {}]
  %s4 = inlined_call_operand.vmem [shape: f32[1,64], index: 4, kind: input, shape index: {}]
  %s5 = inlined_call_operand.hbm [shape: bf16[64,64], index: 5, kind: input, shape index: {}]
  %s6 = inlined_call_operand.vmem [shape: f32[1,64], index: 6, kind: input, shape index: {}]
  %s7 = inlined_call_operand.hbm [shape: f32[2,128], index: 7, kind: output, shape index: {}]
  %s8 = sld [smem:[#allocation0]]
  $region54: #{tpu_custom_call.1} parent=0
    _
  %s10 = ssub.s32 1, %s8
  %s11 = scalar_select 0, %s10, %s8
  $region1: #{tpu_custom_call.1} parent=0
    #allocation2 [shape = 'u8[1024]{0}', space=vmem, size = 0x400, scoped, tag = 'input window, operand 0, single buffered']
    #allocation3 [shape = 's32[1]{0}', space=sflag, size = 0x4, scoped, tag = 'scoped memory for tpu_custom_call.1']
    #allocation4 [shape = 's32[1]{0}', space=sflag, size = 0x4, scoped, tag = 'scoped memory for tpu_custom_call.1']
    #allocation5 [shape = 'u8[2048]{0}', space=vmem, size = 0x800, scoped, tag = 'input window, operand 1, single buffered']
    #allocation6 [shape = 's32[1]{0}', space=sflag, size = 0x4, scoped, tag = 'scoped memory for tpu_custom_call.1']
    #allocation7 [shape = 'u8[16384]{0}', space=vmem, size = 0x4000, scoped, tag = 'input window, operand 3, single buffered']
    #allocation8 [shape = 'u8[16384]{0}', space=vmem, size = 0x4000, scoped, tag = 'input window, operand 5, single buffered']
    #allocation9 [shape = 's32[1]{0}', space=sflag, size = 0x4, scoped, tag = 'scoped memory for tpu_custom_call.1']
    #allocation10 [shape = 'u8[1024]{0}', space=vmem, size = 0x400, scoped, tag = 'output window, operand 0, single buffered']
    %12 = vsyncpa [#allocation3], 0
    %13 = vsyncpa [#allocation6], 0
    %14 = vsyncpa [#allocation9], 0
    %15 = vsyncpa [#allocation4], 0
    // Predicated region
    $region2: #{tpu_custom_call.1} parent=1 // pred_check
      _
    $region3: #{tpu_custom_call.1} parent=1 // pred_check_branch
      %17 = sbr.rel (0) target = $region5
    $region4: #{tpu_custom_call.1} parent=1 // pred_region
      %s19 = ssub.s32 32, 32
      %20 = vsyncadd [#allocation3], %s19
      %s22 = sshll.u32 [#allocation2], 4
      %s23 = int_to_ptr.vmem [resolvable:$true] %s22
      %25 = dma.hbm_to_vmem [thread:$0]  %s0, 32, %s23, [#allocation3]
    $region5: #{tpu_custom_call.1} parent=1 // pred_fallthru
      _
    // Predicated region
    $region6: #{tpu_custom_call.1} parent=1 // pred_check
      _
    $region7: #{tpu_custom_call.1} parent=1 // pred_check_branch
      %27 = sbr.rel (0) target = $region9
    $region8: #{tpu_custom_call.1} parent=1 // pred_region
      %s29 = ssub.s32 64, 64
      %30 = vsyncadd [#allocation6], %s29
      %s32 = sshll.u32 [#allocation5], 4
      %s33 = int_to_ptr.vmem [resolvable:$true] %s32
      %35 = dma.hbm_to_vmem [thread:$0]  %s1, 64, %s33, [#allocation6]
    $region9: #{tpu_custom_call.1} parent=1 // pred_fallthru
      _
    // Predicated region
    $region10: #{tpu_custom_call.1} parent=1 // pred_check
      _
    $region11: #{tpu_custom_call.1} parent=1 // pred_check_branch
      %37 = sbr.rel (0) target = $region13
    $region12: #{tpu_custom_call.1} parent=1 // pred_region
      _
    $region13: #{tpu_custom_call.1} parent=1 // pred_fallthru
      _
    // Predicated region
    $region14: #{tpu_custom_call.1} parent=1 // pred_check
      _
    $region15: #{tpu_custom_call.1} parent=1 // pred_check_branch
      %39 = sbr.rel (0) target = $region17
    $region16: #{tpu_custom_call.1} parent=1 // pred_region
      %s41 = ssub.s32 512, 512
      %42 = vsyncadd [#allocation6], %s41
      %s43 = sshll.u32 [#allocation7], 4
      %s44 = int_to_ptr.vmem [resolvable:$true] %s43
      %49 = dma.hbm_to_vmem [thread:$0]  %s3, 512, %s44, [#allocation6], 64, 64, 4
    $region17: #{tpu_custom_call.1} parent=1 // pred_fallthru
      _
    // Predicated region
    $region18: #{tpu_custom_call.1} parent=1 // pred_check
      _
    $region19: #{tpu_custom_call.1} parent=1 // pred_check_branch
      %51 = sbr.rel (0) target = $region21
    $region20: #{tpu_custom_call.1} parent=1 // pred_region
      _
    $region21: #{tpu_custom_call.1} parent=1 // pred_fallthru
      _
    // Predicated region
    $region22: #{tpu_custom_call.1} parent=1 // pred_check
      _
    $region23: #{tpu_custom_call.1} parent=1 // pred_check_branch
      %53 = sbr.rel (0) target = $region25
    $region24: #{tpu_custom_call.1} parent=1 // pred_region
      %s55 = ssub.s32 512, 512
      %56 = vsyncadd [#allocation9], %s55
      %s57 = sshll.u32 [#allocation8], 4
      %s58 = int_to_ptr.vmem [resolvable:$true] %s57
      %63 = dma.hbm_to_vmem [thread:$0]  %s5, 512, %s58, [#allocation9], 64, 64, 4
    $region25: #{tpu_custom_call.1} parent=1 // pred_fallthru
      _
    // Predicated region
    $region26: #{tpu_custom_call.1} parent=1 // pred_check
      _
    $region27: #{tpu_custom_call.1} parent=1 // pred_check_branch
      %65 = sbr.rel (0) target = $region29
    $region28: #{tpu_custom_call.1} parent=1 // pred_region
      _
    $region29: #{tpu_custom_call.1} parent=1 // pred_fallthru
      _
    // Predicated region
    $region30: #{tpu_custom_call.1} parent=1 // pred_check
      _
    $region31: #{tpu_custom_call.1} parent=1 // pred_check_branch
      %67 = sbr.rel (0) target = $region33
    $region32: #{tpu_custom_call.1} parent=1 // pred_region
      %68 = dma.done [#allocation3], 32
    $region33: #{tpu_custom_call.1} parent=1 // pred_fallthru
      _
    // Predicated region
    $region34: #{tpu_custom_call.1} parent=1 // pred_check
      _
    $region35: #{tpu_custom_call.1} parent=1 // pred_check_branch
      %70 = sbr.rel (0) target = $region37
    $region36: #{tpu_custom_call.1} parent=1 // pred_region
      %71 = dma.done [#allocation6], 64
    $region37: #{tpu_custom_call.1} parent=1 // pred_fallthru
      _
    // Predicated region
    $region38: #{tpu_custom_call.1} parent=1 // pred_check
      _
    $region39: #{tpu_custom_call.1} parent=1 // pred_check_branch
      %73 = sbr.rel (0) target = $region41
    $region40: #{tpu_custom_call.1} parent=1 // pred_region
      %74 = dma.done [#allocation6], 512
    $region41: #{tpu_custom_call.1} parent=1 // pred_fallthru
      _
    // Predicated region
    $region42: #{tpu_custom_call.1} parent=1 // pred_check
      _
    $region43: #{tpu_custom_call.1} parent=1 // pred_check_branch
      %76 = sbr.rel (0) target = $region45
    $region44: #{tpu_custom_call.1} parent=1 // pred_region
      %77 = dma.done [#allocation9], 512
    $region45: #{tpu_custom_call.1} parent=1 // pred_fallthru
      _
    %v79 = vld [vmem:[#allocation2] sm:$0x3]
    %v80 = vpack.c.bf16 %v79, %v79
    %v81 = vld [vmem:[#allocation5] sm:$0xf]
    %v82 = vld [vmem:[%s2] sm:$0x1]
    %v84 = vlaneseq
    %v85 = vshrl.u32 %v84, 7
    %v86 = vsub.s32 0, %v85
    %v87 = vrot.slane %v82, %v86
    %vm89 = vcmask 64512
    %v91 = vsel %vm89, %v80, 0
    %vm93 = vcmask 1043456
    %v95 = vsel %vm93, %v81, 0
    %97 = vmatprep.subr.bf16.mxu0 0
    %98 = vmatpush1.bf16.msra.mxu0 %v95
    %99 = vmatprep.subr.bf16.mxu0 0
    %100 = vmatpush1.bf16.msra.mxu0 0
    %101 = vmatprep.subr.bf16.mxu0 0
    %102 = vmatpush1.bf16.msra.mxu0 0
    %103 = vmatprep.subr.bf16.mxu0 0
    %104 = vmatpush1.bf16.msra.mxu0 0
    %105 = vmatprep.subr.bf16.mxu0 0
    %106 = vmatpush1.bf16.msra.mxu0 0
    %107 = vmatprep.subr.bf16.mxu0 0
    %108 = vmatpush1.bf16.msra.mxu0 0
    %109 = vmatprep.subr.bf16.mxu0 0
    %110 = vmatpush1.bf16.msra.mxu0 0
    %111 = vmatprep.subr.bf16.mxu0 0
    %112 = vmatpush1.bf16.msra.mxu0 0
    %113 = vmatprep.subr.bf16.mxu0 0
    %114 = vmatpush1.bf16.msra.mxu0 0
    %115 = vmatprep.subr.bf16.mxu0 0
    %116 = vmatpush1.bf16.msra.mxu0 0
    %117 = vmatprep.subr.bf16.mxu0 0
    %118 = vmatpush1.bf16.msra.mxu0 0
    %119 = vmatprep.subr.bf16.mxu0 0
    %120 = vmatpush1.bf16.msra.mxu0 0
    %121 = vmatprep.subr.bf16.mxu0 0
    %122 = vmatpush1.bf16.msra.mxu0 0
    %123 = vmatprep.subr.bf16.mxu0 0
    %124 = vmatpush1.bf16.msra.mxu0 0
    %125 = vmatprep.subr.bf16.mxu0 0
    %126 = vmatpush1.bf16.msra.mxu0 0
    %127 = vmatprep.subr.bf16.mxu0 0
    %128 = vmatpush1.bf16.msra.mxu0 0
    %129 = vmatprep.mubr.bf16.mxu0 0
    %130 = vmatmul.mubr.bf16.gmra.mrb[0].mxu0 %v91
    %v131 = vpop.f32.mrb[0].mxu0
    %v132 = vadd.f32 %v87, %v131
    %v133 = vpop.f32.mrb[0].mxu0
    %v134 = vpop.f32.mrb[0].mxu0
    %v135 = vpop.f32.mrb[0].mxu0
    %136 = vdwg.mxu0
    %v137 = vmax.f32 %v132, 0.0
    %v138 = vpack.c.bf16 %v137, %v137
    %v139 = vld [vmem:[#allocation7] sm:$0xf]
    %v140 = vld [vmem:[#allocation7 + $0x4] sm:$0xf]
    %v141 = vld [vmem:[#allocation7 + $0x8] sm:$0xf]
    %v142 = vld [vmem:[#allocation7 + $0xc] sm:$0xf]
    %v143 = vld [vmem:[#allocation7 + $0x10] sm:$0xf]
    %v144 = vld [vmem:[#allocation7 + $0x14] sm:$0xf]
    %v145 = vld [vmem:[#allocation7 + $0x18] sm:$0xf]
    %v146 = vld [vmem:[#allocation7 + $0x1c] sm:$0xf]
    %v147 = vld [vmem:[%s4] sm:$0x1]
    %v149 = vlaneseq
    %v150 = vshrl.u32 %v149, 7
    %v151 = vsub.s32 0, %v150
    %v152 = vrot.slane %v147, %v151
    %v162 = vunpack.c.l.b16 %v139
    %v163 = vunpack.c.l.b16 %v140
    %v164 = vunpack.c.l.b16 %v141
    %v165 = vunpack.c.l.b16 %v142
    %v166 = vunpack.c.l.b16 %v143
    %v167 = vunpack.c.l.b16 %v144
    %v168 = vunpack.c.l.b16 %v145
    %v169 = vunpack.c.l.b16 %v146
    %v170 = vpack.c.b16 %v163, %v162
    %v171 = vpack.c.b16 %v165, %v164
    %v172 = vpack.c.b16 %v167, %v166
    %v173 = vpack.c.b16 %v169, %v168
    %vm178 = vcmask 523264
    %v180 = vsel %vm178, %v138, 0
    %182 = vmatprep.subr.bf16.mxu0 0
    %183 = vmatpush1.bf16.msra.mxu0 %v170
    %184 = vmatprep.subr.bf16.mxu0 0
    %185 = vmatpush1.bf16.msra.mxu0 %v171
    %186 = vmatprep.subr.bf16.mxu0 0
    %187 = vmatpush1.bf16.msra.mxu0 %v172
    %188 = vmatprep.subr.bf16.mxu0 0
    %189 = vmatpush1.bf16.msra.mxu0 %v173
    %190 = vmatprep.subr.bf16.mxu0 0
    %191 = vmatpush1.bf16.msra.mxu0 0
    %192 = vmatprep.subr.bf16.mxu0 0
    %193 = vmatpush1.bf16.msra.mxu0 0
    %194 = vmatprep.subr.bf16.mxu0 0
    %195 = vmatpush1.bf16.msra.mxu0 0
    %196 = vmatprep.subr.bf16.mxu0 0
    %197 = vmatpush1.bf16.msra.mxu0 0
    %198 = vmatprep.subr.bf16.mxu0 0
    %199 = vmatpush1.bf16.msra.mxu0 0
    %200 = vmatprep.subr.bf16.mxu0 0
    %201 = vmatpush1.bf16.msra.mxu0 0
    %202 = vmatprep.subr.bf16.mxu0 0
    %203 = vmatpush1.bf16.msra.mxu0 0
    %204 = vmatprep.subr.bf16.mxu0 0
    %205 = vmatpush1.bf16.msra.mxu0 0
    %206 = vmatprep.subr.bf16.mxu0 0
    %207 = vmatpush1.bf16.msra.mxu0 0
    %208 = vmatprep.subr.bf16.mxu0 0
    %209 = vmatpush1.bf16.msra.mxu0 0
    %210 = vmatprep.subr.bf16.mxu0 0
    %211 = vmatpush1.bf16.msra.mxu0 0
    %212 = vmatprep.subr.bf16.mxu0 0
    %213 = vmatpush1.bf16.msra.mxu0 0
    %214 = vmatprep.mubr.bf16.mxu0 0
    %215 = vmatmul.mubr.bf16.gmra.mrb[0].mxu0 %v180
    %v216 = vpop.f32.mrb[0].mxu0
    %v217 = vadd.f32 %v152, %v216
    %v218 = vpop.f32.mrb[0].mxu0
    %v219 = vpop.f32.mrb[0].mxu0
    %v220 = vpop.f32.mrb[0].mxu0
    %221 = vdwg.mxu0
    %v222 = vmax.f32 %v217, 0.0
    %v223 = vpack.c.bf16 %v222, %v222
    %v224 = vld [vmem:[#allocation8] sm:$0xf]
    %v225 = vld [vmem:[#allocation8 + $0x4] sm:$0xf]
    %v226 = vld [vmem:[#allocation8 + $0x8] sm:$0xf]
    %v227 = vld [vmem:[#allocation8 + $0xc] sm:$0xf]
    %v228 = vld [vmem:[#allocation8 + $0x10] sm:$0xf]
    %v229 = vld [vmem:[#allocation8 + $0x14] sm:$0xf]
    %v230 = vld [vmem:[#allocation8 + $0x18] sm:$0xf]
    %v231 = vld [vmem:[#allocation8 + $0x1c] sm:$0xf]
    %v232 = vld [vmem:[%s6] sm:$0x1]
    %v234 = vlaneseq
    %v235 = vshrl.u32 %v234, 7
    %v236 = vsub.s32 0, %v235
    %v237 = vrot.slane %v232, %v236
    %v247 = vunpack.c.l.b16 %v224
    %v248 = vunpack.c.l.b16 %v225
    %v249 = vunpack.c.l.b16 %v226
    %v250 = vunpack.c.l.b16 %v227
    %v251 = vunpack.c.l.b16 %v228
    %v252 = vunpack.c.l.b16 %v229
    %v253 = vunpack.c.l.b16 %v230
    %v254 = vunpack.c.l.b16 %v231
    %v255 = vpack.c.b16 %v248, %v247
    %v256 = vpack.c.b16 %v250, %v249
    %v257 = vpack.c.b16 %v252, %v251
    %v258 = vpack.c.b16 %v254, %v253
    %v264 = vsel %vm178, %v223, 0
    %266 = vmatprep.subr.bf16.mxu0 0
    %267 = vmatpush1.bf16.msra.mxu0 %v255
    %268 = vmatprep.subr.bf16.mxu0 0
    %269 = vmatpush1.bf16.msra.mxu0 %v256
    %270 = vmatprep.subr.bf16.mxu0 0
    %271 = vmatpush1.bf16.msra.mxu0 %v257
    %272 = vmatprep.subr.bf16.mxu0 0
    %273 = vmatpush1.bf16.msra.mxu0 %v258
    %274 = vmatprep.subr.bf16.mxu0 0
    %275 = vmatpush1.bf16.msra.mxu0 0
    %276 = vmatprep.subr.bf16.mxu0 0
    %277 = vmatpush1.bf16.msra.mxu0 0
    %278 = vmatprep.subr.bf16.mxu0 0
    %279 = vmatpush1.bf16.msra.mxu0 0
    %280 = vmatprep.subr.bf16.mxu0 0
    %281 = vmatpush1.bf16.msra.mxu0 0
    %282 = vmatprep.subr.bf16.mxu0 0
    %283 = vmatpush1.bf16.msra.mxu0 0
    %284 = vmatprep.subr.bf16.mxu0 0
    %285 = vmatpush1.bf16.msra.mxu0 0
    %286 = vmatprep.subr.bf16.mxu0 0
    %287 = vmatpush1.bf16.msra.mxu0 0
    %288 = vmatprep.subr.bf16.mxu0 0
    %289 = vmatpush1.bf16.msra.mxu0 0
    %290 = vmatprep.subr.bf16.mxu0 0
    %291 = vmatpush1.bf16.msra.mxu0 0
    %292 = vmatprep.subr.bf16.mxu0 0
    %293 = vmatpush1.bf16.msra.mxu0 0
    %294 = vmatprep.subr.bf16.mxu0 0
    %295 = vmatpush1.bf16.msra.mxu0 0
    %296 = vmatprep.subr.bf16.mxu0 0
    %297 = vmatpush1.bf16.msra.mxu0 0
    %298 = vmatprep.mubr.bf16.mxu0 0
    %299 = vmatmul.mubr.bf16.gmra.mrb[0].mxu0 %v264
    %v300 = vpop.f32.mrb[0].mxu0
    %v301 = vadd.f32 %v237, %v300
    %v302 = vpop.f32.mrb[0].mxu0
    %v303 = vpop.f32.mrb[0].mxu0
    %v304 = vpop.f32.mrb[0].mxu0
    %305 = vdwg.mxu0
    %307 = vrot.lane.b32.xlu0 %v301, 120
    %v308 = vpop.permute.xlu0 %307
    %310 = vrot.lane.b32.xlu0 %v301, 112
    %v311 = vpop.permute.xlu0 %310
    %313 = vrot.lane.b32.xlu0 %v301, 104
    %v314 = vpop.permute.xlu0 %313
    %316 = vrot.lane.b32.xlu0 %v301, 96
    %v317 = vpop.permute.xlu0 %316
    %319 = vrot.lane.b32.xlu0 %v301, 88
    %v320 = vpop.permute.xlu0 %319
    %322 = vrot.lane.b32.xlu0 %v301, 80
    %v323 = vpop.permute.xlu0 %322
    %325 = vrot.lane.b32.xlu0 %v301, 72
    %v326 = vpop.permute.xlu0 %325
    %v328 = vcombine.low %v301, %v311
    %v330 = vunpack.c.l.s4 1983009808
    %v331 = vunpack.c.0.s8 %v330
    %v332 = vlaneseq
    %v333 = vshrl.u32 %v332, 7
    %v334 = vsub.s32 %v331, %v333
    %v335 = vrot.slane %v328, %v334
    %v336 = vcombine.low %v308, %v314
    %v338 = vunpack.c.l.s4 1983009808
    %v339 = vunpack.c.0.s8 %v338
    %v340 = vlaneseq
    %v341 = vshrl.u32 %v340, 7
    %v342 = vsub.s32 %v339, %v341
    %v343 = vrot.slane %v336, %v342
    %v344 = vcombine.low %v317, %v323
    %v346 = vunpack.c.l.s4 1983009808
    %v347 = vunpack.c.0.s8 %v346
    %v348 = vlaneseq
    %v349 = vshrl.u32 %v348, 7
    %v350 = vsub.s32 %v347, %v349
    %v351 = vrot.slane %v344, %v350
    %v352 = vcombine.low %v320, %v326
    %v354 = vunpack.c.l.s4 1983009808
    %v355 = vunpack.c.0.s8 %v354
    %v356 = vlaneseq
    %v357 = vshrl.u32 %v356, 7
    %v358 = vsub.s32 %v355, %v357
    %v359 = vrot.slane %v352, %v358
    %v360 = vcombine.low %v335, %v343
    %v362 = vunpack.c.l.s4 1934713408
    %v363 = vunpack.c.0.s8 %v362
    %v364 = vlaneseq
    %v365 = vshrl.u32 %v364, 7
    %v366 = vsub.s32 %v363, %v365
    %v367 = vrot.slane %v360, %v366
    %v368 = vcombine.low %v351, %v359
    %v370 = vunpack.c.l.s4 1934713408
    %v371 = vunpack.c.0.s8 %v370
    %v372 = vlaneseq
    %v373 = vshrl.u32 %v372, 7
    %v374 = vsub.s32 %v371, %v373
    %v375 = vrot.slane %v368, %v374
    %v376 = vcombine.low %v367, %v375
    %v377 = vcombine.high %v367, %v375
    %v378 = vlaneseq
    %v379 = vshrl.u32 %v378, 7
    %v380 = vsub.s32 0, %v379
    %v381 = vrot.slane %v376, %v380
    %v382 = vlaneseq
    %v383 = vshrl.u32 %v382, 7
    %v384 = vsub.s32 0, %v383
    %v385 = vrot.slane %v377, %v384
    %v386 = vmul.f32 %v376, %v381
    %v387 = vmul.f32 %v377, %v385
    %v388 = vsel %vm89, %v386, 0.0
    %389 = vadd.xlane.f32.xlu0 %v388
    %v390 = vpop.xlane.xlu0 %389
    %v391 = vsel %vm89, %v387, 0.0
    %392 = vadd.xlane.f32.xlu0 %v391
    %v393 = vpop.xlane.xlu0 %392
    %v394 = vlaneseq
    %v395 = vshrl.u32 %v394, 7
    %v396 = vsub.s32 1, %v395
    %v397 = vrot.slane %v376, %v396
    %v398 = vlaneseq
    %v399 = vshrl.u32 %v398, 7
    %v400 = vsub.s32 1, %v399
    %v401 = vrot.slane %v377, %v400
    %v402 = vmul.f32 %v376, %v397
    %v403 = vmul.f32 %v377, %v401
    %v404 = vsel %vm89, %v402, 0.0
    %405 = vadd.xlane.f32.xlu0 %v404
    %v406 = vpop.xlane.xlu0 %405
    %v407 = vsel %vm89, %v403, 0.0
    %408 = vadd.xlane.f32.xlu0 %v407
    %v409 = vpop.xlane.xlu0 %408
    %v410 = vlaneseq
    %v411 = vshrl.u32 %v410, 7
    %v412 = vsub.s32 2, %v411
    %v413 = vrot.slane %v376, %v412
    %v414 = vlaneseq
    %v415 = vshrl.u32 %v414, 7
    %v416 = vsub.s32 2, %v415
    %v417 = vrot.slane %v377, %v416
    %v418 = vmul.f32 %v376, %v413
    %v419 = vmul.f32 %v377, %v417
    %v420 = vsel %vm89, %v418, 0.0
    %421 = vadd.xlane.f32.xlu0 %v420
    %v422 = vpop.xlane.xlu0 %421
    %v423 = vsel %vm89, %v419, 0.0
    %424 = vadd.xlane.f32.xlu0 %v423
    %v425 = vpop.xlane.xlu0 %424
    %v426 = vlaneseq
    %v427 = vshrl.u32 %v426, 7
    %v428 = vsub.s32 3, %v427
    %v429 = vrot.slane %v376, %v428
    %v430 = vlaneseq
    %v431 = vshrl.u32 %v430, 7
    %v432 = vsub.s32 3, %v431
    %v433 = vrot.slane %v377, %v432
    %v434 = vmul.f32 %v376, %v429
    %v435 = vmul.f32 %v377, %v433
    %v436 = vsel %vm89, %v434, 0.0
    %437 = vadd.xlane.f32.xlu0 %v436
    %v438 = vpop.xlane.xlu0 %437
    %v439 = vsel %vm89, %v435, 0.0
    %440 = vadd.xlane.f32.xlu0 %v439
    %v441 = vpop.xlane.xlu0 %440
    %v442 = vlaneseq
    %v443 = vshrl.u32 %v442, 7
    %v444 = vsub.s32 4, %v443
    %v445 = vrot.slane %v376, %v444
    %v446 = vlaneseq
    %v447 = vshrl.u32 %v446, 7
    %v448 = vsub.s32 4, %v447
    %v449 = vrot.slane %v377, %v448
    %v450 = vmul.f32 %v376, %v445
    %v451 = vmul.f32 %v377, %v449
    %v452 = vsel %vm89, %v450, 0.0
    %453 = vadd.xlane.f32.xlu0 %v452
    %v454 = vpop.xlane.xlu0 %453
    %v455 = vsel %vm89, %v451, 0.0
    %456 = vadd.xlane.f32.xlu0 %v455
    %v457 = vpop.xlane.xlu0 %456
    %v458 = vlaneseq
    %v459 = vshrl.u32 %v458, 7
    %v460 = vsub.s32 5, %v459
    %v461 = vrot.slane %v376, %v460
    %v462 = vlaneseq
    %v463 = vshrl.u32 %v462, 7
    %v464 = vsub.s32 5, %v463
    %v465 = vrot.slane %v377, %v464
    %v466 = vmul.f32 %v376, %v461
    %v467 = vmul.f32 %v377, %v465
    %v468 = vsel %vm89, %v466, 0.0
    %469 = vadd.xlane.f32.xlu0 %v468
    %v470 = vpop.xlane.xlu0 %469
    %v471 = vsel %vm89, %v467, 0.0
    %472 = vadd.xlane.f32.xlu0 %v471
    %v473 = vpop.xlane.xlu0 %472
    %v474 = vlaneseq
    %v475 = vshrl.u32 %v474, 7
    %v476 = vsub.s32 6, %v475
    %v477 = vrot.slane %v376, %v476
    %v478 = vlaneseq
    %v479 = vshrl.u32 %v478, 7
    %v480 = vsub.s32 6, %v479
    %v481 = vrot.slane %v377, %v480
    %v482 = vmul.f32 %v376, %v477
    %v483 = vmul.f32 %v377, %v481
    %v484 = vsel %vm89, %v482, 0.0
    %485 = vadd.xlane.f32.xlu0 %v484
    %v486 = vpop.xlane.xlu0 %485
    %v487 = vsel %vm89, %v483, 0.0
    %488 = vadd.xlane.f32.xlu0 %v487
    %v489 = vpop.xlane.xlu0 %488
    %v490 = vlaneseq
    %v491 = vshrl.u32 %v490, 7
    %v492 = vsub.s32 7, %v491
    %v493 = vrot.slane %v376, %v492
    %v494 = vlaneseq
    %v495 = vshrl.u32 %v494, 7
    %v496 = vsub.s32 7, %v495
    %v497 = vrot.slane %v377, %v496
    %v498 = vmul.f32 %v376, %v493
    %v499 = vmul.f32 %v377, %v497
    %v500 = vsel %vm89, %v498, 0.0
    %501 = vadd.xlane.f32.xlu0 %v500
    %v502 = vpop.xlane.xlu0 %501
    %v503 = vsel %vm89, %v499, 0.0
    %504 = vadd.xlane.f32.xlu0 %v503
    %v505 = vpop.xlane.xlu0 %504
    %v508 = vlaneseq
    %v509 = vand.u32 %v508, 127
    %v510 = vlaneseq
    %v511 = vshrl.u32 %v510, 7
    %v512 = vsub.s32 %v509, %v511
    %v513 = vrot.slane %v390, %v512
    %v514 = vlaneseq
    %v515 = vshrl.u32 %v514, 7
    %v516 = vsub.s32 %v509, %v515
    %v517 = vrot.slane %v393, %v516
    %vm518 = vcmask 1041409
    %v519 = vsel %vm518, %v517, %v513
    %v523 = vadd.s32 %v509, 4294967288
    %v524 = vlaneseq
    %v525 = vshrl.u32 %v524, 7
    %v526 = vsub.s32 %v523, %v525
    %v527 = vrot.slane %v406, %v526
    %v528 = vlaneseq
    %v529 = vshrl.u32 %v528, 7
    %v530 = vsub.s32 %v523, %v529
    %v531 = vrot.slane %v409, %v530
    %v532 = vsel %vm518, %v531, %v527
    %v536 = vadd.s32 %v509, 4294967280
    %v537 = vlaneseq
    %v538 = vshrl.u32 %v537, 7
    %v539 = vsub.s32 %v536, %v538
    %v540 = vrot.slane %v422, %v539
    %v541 = vlaneseq
    %v542 = vshrl.u32 %v541, 7
    %v543 = vsub.s32 %v536, %v542
    %v544 = vrot.slane %v425, %v543
    %v545 = vsel %vm518, %v544, %v540
    %v549 = vadd.s32 %v509, 4294967272
    %v550 = vlaneseq
    %v551 = vshrl.u32 %v550, 7
    %v552 = vsub.s32 %v549, %v551
    %v553 = vrot.slane %v438, %v552
    %v554 = vlaneseq
    %v555 = vshrl.u32 %v554, 7
    %v556 = vsub.s32 %v549, %v555
    %v557 = vrot.slane %v441, %v556
    %v558 = vsel %vm518, %v557, %v553
    %v562 = vadd.s32 %v509, 4294967264
    %v563 = vlaneseq
    %v564 = vshrl.u32 %v563, 7
    %v565 = vsub.s32 %v562, %v564
    %v566 = vrot.slane %v454, %v565
    %v567 = vlaneseq
    %v568 = vshrl.u32 %v567, 7
    %v569 = vsub.s32 %v562, %v568
    %v570 = vrot.slane %v457, %v569
    %v571 = vsel %vm518, %v570, %v566
    %v575 = vadd.s32 %v509, 4294967256
    %v576 = vlaneseq
    %v577 = vshrl.u32 %v576, 7
    %v578 = vsub.s32 %v575, %v577
    %v579 = vrot.slane %v470, %v578
    %v580 = vlaneseq
    %v581 = vshrl.u32 %v580, 7
    %v582 = vsub.s32 %v575, %v581
    %v583 = vrot.slane %v473, %v582
    %v584 = vsel %vm518, %v583, %v579
    %v588 = vadd.s32 %v509, 4294967248
    %v589 = vlaneseq
    %v590 = vshrl.u32 %v589, 7
    %v591 = vsub.s32 %v588, %v590
    %v592 = vrot.slane %v486, %v591
    %v593 = vlaneseq
    %v594 = vshrl.u32 %v593, 7
    %v595 = vsub.s32 %v588, %v594
    %v596 = vrot.slane %v489, %v595
    %v597 = vsel %vm518, %v596, %v592
    %v601 = vadd.s32 %v509, 4294967240
    %v602 = vlaneseq
    %v603 = vshrl.u32 %v602, 7
    %v604 = vsub.s32 %v601, %v603
    %v605 = vrot.slane %v502, %v604
    %v606 = vlaneseq
    %v607 = vshrl.u32 %v606, 7
    %v608 = vsub.s32 %v601, %v607
    %v609 = vrot.slane %v505, %v608
    %v610 = vsel %vm518, %v609, %v605
    %v612 = vsel %vm89, %v519, %v532
    %vm613 = vcmask 130048
    %v614 = vsel %vm613, %v612, %v545
    %vm615 = vcmask 195584
    %v616 = vsel %vm615, %v614, %v558
    %vm617 = vcmask 261120
    %v618 = vsel %vm617, %v616, %v571
    %vm619 = vcmask 326656
    %v620 = vsel %vm619, %v618, %v584
    %vm621 = vcmask 392192
    %v622 = vsel %vm621, %v620, %v597
    %vm623 = vcmask 457728
    %v624 = vsel %vm623, %v622, %v610
    %v625 = vsel %vm178, %v624, 0.0
    %626 = vst [vmem:[#allocation10] sm:$0x3] %v625
    // Predicated region
    $region46: #{tpu_custom_call.1} parent=1 // pred_check
      _
    $region47: #{tpu_custom_call.1} parent=1 // pred_check_branch
      %628 = sbr.rel (0) target = $region49
    $region48: #{tpu_custom_call.1} parent=1 // pred_region
      %s630 = ssub.s32 32, 32
      %631 = vsyncadd [#allocation4], %s630
      %s633 = sshll.u32 [#allocation10], 4
      %s634 = int_to_ptr.vmem [resolvable:$true] %s633
      %636 = dma.vmem_to_hbm [thread:$0]  %s634, 32, %s7, [#allocation4]
    $region49: #{tpu_custom_call.1} parent=1 // pred_fallthru
      _
    // Predicated region
    $region50: #{tpu_custom_call.1} parent=1 // pred_check
      _
    $region51: #{tpu_custom_call.1} parent=1 // pred_check_branch
      %638 = sbr.rel (0) target = $region53
    $region52: #{tpu_custom_call.1} parent=1 // pred_region
      %639 = dma.done [#allocation4], 32
    $region53: #{tpu_custom_call.1} parent=1 // pred_fallthru
      _
    %640 = vsyncpa [#allocation3], 1
    %641 = vsyncpa [#allocation6], 1
    %642 = vsyncpa [#allocation9], 1
    %643 = vsyncpa [#allocation4], 1

</llo_original>
